<compile_context>
chip_gen: v6e
topology: v6e:2x2x1
jax: 0.10.0
libtpu: 0.0.40
codegen_flags: <defaults>
</compile_context>

<pallas_src>
import functools

import jax
import jax.numpy as jnp
from jax.experimental import pallas as pl
from jax.experimental.pallas import tpu as pltpu

IN_DIM = 28 * 28   # 784
_NEG_SLOPE = 0.01  # nn.LeakyReLU() default
_LANE = 128


def _round_up(x, m):
    return (x + m - 1) // m * m


def _leaky_relu(x):
    # max(x, slope*x) == LeakyReLU for 0 < slope < 1: mul+max, no cmp+select.
    return jnp.maximum(x, _NEG_SLOPE * x)


def _bf16_dot(a_f32, w_ref):
    """f32 activations x bf16 weights -> f32 accumulation on the MXU."""
    return jnp.dot(
        a_f32.astype(jnp.bfloat16), w_ref[...], preferred_element_type=jnp.float32
    )


def vae_fc_kernel(
    latent_pad,
    # inputs (batch-tiled)
    x_ref, eps_ref,
    # weights (bf16, VMEM-resident) / biases (f32, VMEM-resident)
    w_e1_ref, b_e1_ref,
    w_e2_ref, b_e2_ref,
    w_ml_ref, b_ml_ref,      # fused, lane-aligned [mu | logvar] projection
    w_d1_ref, b_d1_ref,      # latent rows zero-padded to latent_pad
    w_d2_ref, b_d2_ref,
    w_d3_ref, b_d3_ref,
    # outputs (batch-tiled)
    yhat_ref, ml_ref,
):
    x = x_ref[...]  # (TB, 784) f32

    # ---- encoder ----
    h = _leaky_relu(_bf16_dot(x, w_e1_ref) + b_e1_ref[...])
    h = _leaky_relu(_bf16_dot(h, w_e2_ref) + b_e2_ref[...])
    ml = _bf16_dot(h, w_ml_ref) + b_ml_ref[...]      # (TB, 2*latent_pad)

    # lane-aligned split: latent_pad is a multiple of 128 -> no XLU realign.
    mean = ml[:, :latent_pad]
    logvar = ml[:, latent_pad:]

    # ---- reparameterization (matches the PyTorch module: scale = exp(logvar)) ----
    # Padded latent columns are exact zeros (0 + exp(0)*0), and the padded rows
    # of w_d1 are zero, so padding never changes the result.
    z = mean + jnp.exp(logvar) * eps_ref[...]

    # ---- decoder ----
    d = _leaky_relu(_bf16_dot(z, w_d1_ref) + b_d1_ref[...])
    d = _leaky_relu(_bf16_dot(d, w_d2_ref) + b_d2_ref[...])
    logits = _bf16_dot(d, w_d3_ref) + b_d3_ref[...]
    # sigmoid: exp + approx reciprocal both on the EUP -> VALU relief.
    yhat = pl.reciprocal(1.0 + jnp.exp(-logits), approx=True)

    yhat_ref[...] = yhat.astype(yhat_ref.dtype)
    ml_ref[...] = ml.astype(ml_ref.dtype)


def init_params(hidden_dim: int, latent_dim: int, key):
    """Deterministic init. Weights stored (in, out) bf16; biases (1, out) f32."""
    dims = [
        ("e1", IN_DIM, hidden_dim),
        ("e2", hidden_dim, hidden_dim),
        ("mu", hidden_dim, latent_dim),
        ("lv", hidden_dim, latent_dim),
        ("d1", latent_dim, hidden_dim),
        ("d2", hidden_dim, hidden_dim),
        ("d3", hidden_dim, IN_DIM),
    ]
    params = {}
    for name, fan_in, fan_out in dims:
        key, kw, kb = jax.random.split(key, 3)
        bound = 1.0 / jnp.sqrt(fan_in)
        w = jax.random.uniform(kw, (fan_in, fan_out), jnp.float32, -bound, bound)
        b = jax.random.uniform(kb, (1, fan_out), jnp.float32, -bound, bound)
        params["w_" + name] = w.astype(jnp.bfloat16)
        params["b_" + name] = b
    return params


def pack_kernel_params(params, latent_dim: int):
    """Hoisted packing (call ONCE, outside the jitted forward).

    Builds the fused, lane-aligned [mu | logvar] projection (H, 2*LP) with mu
    in columns [0, L) and logvar in columns [LP, LP+L), LP = round_up(L, 128),
    plus a latent-row zero-padded decoder_1 weight (LP, H)."""
    L = latent_dim
    LP = max(_round_up(L, _LANE), _LANE)
    H = params["w_e2"].shape[1]

    w_ml = jnp.zeros((H, 2 * LP), jnp.bfloat16)
    w_ml = w_ml.at[:, :L].set(params["w_mu"])
    w_ml = w_ml.at[:, LP:LP + L].set(params["w_lv"])
    b_ml = jnp.zeros((1, 2 * LP), jnp.float32)
    b_ml = b_ml.at[:, :L].set(params["b_mu"])
    b_ml = b_ml.at[:, LP:LP + L].set(params["b_lv"])
    w_d1p = jnp.zeros((LP, H), jnp.bfloat16).at[:L, :].set(params["w_d1"])

    kp = dict(params)
    kp["w_ml"], kp["b_ml"], kp["w_d1p"] = w_ml, b_ml, w_d1p
    return kp


def _vmem_cap_bytes():
    """Generation-aware cap for the scoped-VMEM limit."""
    try:
        kind = (jax.devices()[0].device_kind or "").lower()
    except Exception:
        kind = ""
    if "v7" in kind:
        return 48 * 1024 * 1024          # v7x: 64 MiB physical per TC
    return 100 * 1024 * 1024             # v5e / v6e: 128 MiB physical


@functools.partial(
    jax.jit, static_argnames=("hidden_dim", "latent_dim", "block_b", "yhat_dtype")
)
def vae_fc_forward(x_nchw, eps, kparams, *, hidden_dim: int, latent_dim: int,
                   block_b: int = 256, yhat_dtype=jnp.float32):
    B = x_nchw.shape[0]
    H, L = hidden_dim, latent_dim
    LP = max(_round_up(L, _LANE), _LANE)

    x_flat = x_nchw.reshape(B, IN_DIM).astype(jnp.float32)  # flatten(start_dim=1)
    eps = eps.astype(jnp.float32)

    # Batch tile: multiple of 8 sublanes, capped at block_b, and (when the
    # batch allows it) split so the grid has >= 2 steps -> both v7x TCs work.
    B8 = _round_up(B, 8)
    TB = min(block_b, B8)
    if B8 // TB < 2 and B8 > 8:
        TB = _round_up(pl.cdiv(B8, 2), 8)
    B_pad = _round_up(B, TB)

    x_flat = jnp.pad(x_flat, ((0, B_pad - B), (0, 0)))
    eps_pad = jnp.pad(eps, ((0, B_pad - B), (0, LP - L)))

    def batch_spec(feat):
        return pl.BlockSpec((TB, feat), lambda i: (i, 0))

    def resident_spec(shape):
        # Grid-invariant block: fetched once, single-buffered (no wasted 2nd buf).
        return pl.BlockSpec(shape, lambda i: (0, 0), pipeline_mode=pl.Buffered(1))

    in_specs = [
        batch_spec(IN_DIM),                                      # x
        batch_spec(LP),                                          # eps (lane-padded)
        resident_spec((IN_DIM, H)), resident_spec((1, H)),       # encoder_1
        resident_spec((H, H)),      resident_spec((1, H)),       # encoder_2
        resident_spec((H, 2 * LP)), resident_spec((1, 2 * LP)),  # fused mu|logvar
        resident_spec((LP, H)),     resident_spec((1, H)),       # decoder_1 (padded)
        resident_spec((H, H)),      resident_spec((1, H)),       # decoder_2
        resident_spec((H, IN_DIM)), resident_spec((1, IN_DIM)),  # decoder_3
    ]
    out_specs = (
        pl.BlockSpec((TB, IN_DIM), lambda i: (i, 0)),
        pl.BlockSpec((TB, 2 * LP), lambda i: (i, 0)),            # lane-dense ml slab
    )
    out_shape = (
        jax.ShapeDtypeStruct((B_pad, IN_DIM), yhat_dtype),
        jax.ShapeDtypeStruct((B_pad, 2 * LP), jnp.float32),
    )

    # --- VMEM budget derived from the actual shapes -------------------------
    weight_elems = (IN_DIM * H + H * H + H * 2 * LP + LP * H + H * H + H * IN_DIM)
    bias_elems = H + H + 2 * LP + H + H + IN_DIM
    yhat_item = jnp.dtype(yhat_dtype).itemsize
    weight_bytes = 2 * weight_elems                 # bf16, single-buffered
    bias_bytes = 4 * bias_elems                     # f32, single-buffered
    stream_bytes = 2 * (                            # double-buffered streamed tiles
        4 * TB * IN_DIM                             # x
        + 4 * TB * LP                               # eps
        + yhat_item * TB * IN_DIM                   # yhat
        + 4 * TB * 2 * LP                           # ml
    )
    act_bytes = 4 * 4 * TB * max(H, IN_DIM, 2 * LP)  # headroom for in-kernel temps
    required = weight_bytes + bias_bytes + stream_bytes + act_bytes
    vmem_limit = int(min(_vmem_cap_bytes(),
                         max(32 * 1024 * 1024, required * 3 // 2 + (4 << 20))))

    # Advisory cost estimate so XLA schedules this call against surrounding ops.
    flops = 2 * B_pad * weight_elems
    transcendentals = B_pad * (LP + 2 * IN_DIM)
    io_bytes = (weight_bytes + bias_bytes
                + 4 * B_pad * (IN_DIM + LP + 2 * LP) + yhat_item * B_pad * IN_DIM)
    cost = pl.CostEstimate(
        flops=flops, transcendentals=transcendentals, bytes_accessed=io_bytes
    )

    yhat_pad, ml_pad = pl.pallas_call(
        functools.partial(vae_fc_kernel, LP),
        out_shape=out_shape,
        grid=(B_pad // TB,),
        in_specs=in_specs,
        out_specs=out_specs,
        compiler_params=pltpu.CompilerParams(
            dimension_semantics=("parallel",),
            vmem_limit_bytes=vmem_limit,
        ),
        cost_estimate=cost,
    )(
        x_flat, eps_pad,
        kparams["w_e1"], kparams["b_e1"],
        kparams["w_e2"], kparams["b_e2"],
        kparams["w_ml"], kparams["b_ml"],
        kparams["w_d1p"], kparams["b_d1"],
        kparams["w_d2"], kparams["b_d2"],
        kparams["w_d3"], kparams["b_d3"],
    )

    y_hat = yhat_pad[:B].astype(jnp.float32).reshape(B, 1, 28, 28)  # unflatten(1,(1,28,28))
    mean = ml_pad[:B, :L]
    logvar = ml_pad[:B, LP:LP + L]
    return y_hat, mean, logvar


def reference_forward(x_nchw, eps, params):
    """Pure-JAX reference using the same bf16-weight / f32-accumulate math."""
    B = x_nchw.shape[0]

    def dot(a, w):
        return jnp.dot(a.astype(jnp.bfloat16), w, preferred_element_type=jnp.float32)

    x = x_nchw.reshape(B, IN_DIM).astype(jnp.float32)
    h = _leaky_relu(dot(x, params["w_e1"]) + params["b_e1"])
    h = _leaky_relu(dot(h, params["w_e2"]) + params["b_e2"])
    mean = dot(h, params["w_mu"]) + params["b_mu"]
    logvar = dot(h, params["w_lv"]) + params["b_lv"]
    z = mean + jnp.exp(logvar) * eps
    d = _leaky_relu(dot(z, params["w_d1"]) + params["b_d1"])
    d = _leaky_relu(dot(d, params["w_d2"]) + params["b_d2"])
    y_hat = jax.nn.sigmoid(dot(d, params["w_d3"]) + params["b_d3"])
    return y_hat.reshape(B, 1, 28, 28), mean, logvar


if __name__ == "__main__":
    B, HIDDEN, LATENT = 2, 32, 16

    key = jax.random.PRNGKey(0)
    k_x, k_eps, k_params = jax.random.split(key, 3)

    x = jax.random.uniform(k_x, (B, 1, 28, 28), jnp.float32)   # NCHW like PyTorch
    eps = jax.random.normal(k_eps, (B, LATENT), jnp.float32)   # torch.randn_like(mean)
    params = init_params(HIDDEN, LATENT, k_params)
    kparams = pack_kernel_params(params, LATENT)               # fused/padded, hoisted

    y_hat, mean, logvar = vae_fc_forward(
        x, eps, kparams, hidden_dim=HIDDEN, latent_dim=LATENT
    )
    jax.block_until_ready((y_hat, mean, logvar))

    # Correctness check against a pure-JAX reference with matching precision.
    y_ref, m_ref, lv_ref = reference_forward(x, eps, params)
    assert y_hat.shape == (B, 1, 28, 28)
    assert mean.shape == (B, LATENT) and logvar.shape == (B, LATENT)
    assert jnp.allclose(mean, m_ref, atol=1e-4, rtol=1e-4)
    assert jnp.allclose(logvar, lv_ref, atol=1e-4, rtol=1e-4)
    # y_hat uses an approx reciprocal for the sigmoid divide -> slightly looser tol.
    assert jnp.allclose(y_hat, y_ref, atol=2e-3, rtol=2e-3)

    print("KERNEL_OK")
</pallas_src>

<mosaic_0001>
module attributes {stable_mosaic.version = 11 : i64} {
  func.func @vae_fc_kernel(%arg0: i32, %arg1: memref<8x784xf32, #tpu.memory_space<vmem>>, %arg2: memref<8x128xf32, #tpu.memory_space<vmem>>, %arg3: memref<784x32xbf16, #tpu.memory_space<vmem>>, %arg4: memref<1x32xf32, #tpu.memory_space<vmem>>, %arg5: memref<32x32xbf16, #tpu.memory_space<vmem>>, %arg6: memref<1x32xf32, #tpu.memory_space<vmem>>, %arg7: memref<32x256xbf16, #tpu.memory_space<vmem>>, %arg8: memref<1x256xf32, #tpu.memory_space<vmem>>, %arg9: memref<128x32xbf16, #tpu.memory_space<vmem>>, %arg10: memref<1x32xf32, #tpu.memory_space<vmem>>, %arg11: memref<32x32xbf16, #tpu.memory_space<vmem>>, %arg12: memref<1x32xf32, #tpu.memory_space<vmem>>, %arg13: memref<32x784xbf16, #tpu.memory_space<vmem>>, %arg14: memref<1x784xf32, #tpu.memory_space<vmem>>, %arg15: memref<8x784xf32, #tpu.memory_space<vmem>>, %arg16: memref<8x256xf32, #tpu.memory_space<vmem>>) attributes {dimension_semantics = [#tpu.dimension_semantics<parallel>], iteration_bounds = array<i64: 1>, scalar_prefetch = 0 : i64, scratch_operands = 0 : i64, tpu.core_type = #tpu.core_type<tc>, window_params = [{transform_indices = @transform_0, window_bounds = array<i64: 8, 784>}, {transform_indices = @transform_1, window_bounds = array<i64: 8, 128>}, {pipeline_mode = #tpu.pipeline_mode<synchronous>, transform_indices = @transform_2, window_bounds = array<i64: 784, 32>}, {pipeline_mode = #tpu.pipeline_mode<synchronous>, transform_indices = @transform_3, window_bounds = array<i64: 1, 32>}, {pipeline_mode = #tpu.pipeline_mode<synchronous>, transform_indices = @transform_4, window_bounds = array<i64: 32, 32>}, {pipeline_mode = #tpu.pipeline_mode<synchronous>, transform_indices = @transform_5, window_bounds = array<i64: 1, 32>}, {pipeline_mode = #tpu.pipeline_mode<synchronous>, transform_indices = @transform_6, window_bounds = array<i64: 32, 256>}, {pipeline_mode = #tpu.pipeline_mode<synchronous>, transform_indices = @transform_7, window_bounds = array<i64: 1, 256>}, {pipeline_mode = #tpu.pipeline_mode<synchronous>, transform_indices = @transform_8, window_bounds = array<i64: 128, 32>}, {pipeline_mode = #tpu.pipeline_mode<synchronous>, transform_indices = @transform_9, window_bounds = array<i64: 1, 32>}, {pipeline_mode = #tpu.pipeline_mode<synchronous>, transform_indices = @transform_10, window_bounds = array<i64: 32, 32>}, {pipeline_mode = #tpu.pipeline_mode<synchronous>, transform_indices = @transform_11, window_bounds = array<i64: 1, 32>}, {pipeline_mode = #tpu.pipeline_mode<synchronous>, transform_indices = @transform_12, window_bounds = array<i64: 32, 784>}, {pipeline_mode = #tpu.pipeline_mode<synchronous>, transform_indices = @transform_13, window_bounds = array<i64: 1, 784>}, {transform_indices = @transform_14, window_bounds = array<i64: 8, 784>}, {transform_indices = @transform_15, window_bounds = array<i64: 8, 256>}]} {
    %c0 = arith.constant 0 : index
    %c0_0 = arith.constant 0 : index
    %0 = vector.load %arg1[%c0, %c0_0] : memref<8x784xf32, #tpu.memory_space<vmem>>, vector<8x784xf32>
    %1 = arith.truncf %0 : vector<8x784xf32> to vector<8x784xbf16>
    %c0_1 = arith.constant 0 : index
    %c0_2 = arith.constant 0 : index
    %2 = vector.load %arg3[%c0_1, %c0_2] : memref<784x32xbf16, #tpu.memory_space<vmem>>, vector<784x32xbf16>
    %cst = arith.constant dense<0.000000e+00> : vector<8x32xf32>
    %3 = tpu.matmul %1, %2, %cst {dimension_numbers = #tpu.dot_dimension_numbers<[1], [0], [0], [1], [0, 0, 1, 1], [], []>} : vector<8x784xbf16>, vector<784x32xbf16>, vector<8x32xf32> -> vector<8x32xf32>
    %c0_3 = arith.constant 0 : index
    %c0_4 = arith.constant 0 : index
    %4 = vector.load %arg4[%c0_3, %c0_4] : memref<1x32xf32, #tpu.memory_space<vmem>>, vector<1x32xf32>
    %5 = vector.broadcast %4 : vector<1x32xf32> to vector<8x32xf32>
    %6 = arith.addf %3, %5 : vector<8x32xf32>
    %cst_5 = arith.constant 0.00999999977 : f32
    %7 = vector.broadcast %cst_5 : f32 to vector<8x32xf32>
    %8 = arith.mulf %7, %6 : vector<8x32xf32>
    %9 = arith.maximumf %6, %8 : vector<8x32xf32>
    %10 = arith.truncf %9 : vector<8x32xf32> to vector<8x32xbf16>
    %c0_6 = arith.constant 0 : index
    %c0_7 = arith.constant 0 : index
    %11 = vector.load %arg5[%c0_6, %c0_7] : memref<32x32xbf16, #tpu.memory_space<vmem>>, vector<32x32xbf16>
    %cst_8 = arith.constant dense<0.000000e+00> : vector<8x32xf32>
    %12 = tpu.matmul %10, %11, %cst_8 {dimension_numbers = #tpu.dot_dimension_numbers<[1], [0], [0], [1], [0, 0, 1, 1], [], []>} : vector<8x32xbf16>, vector<32x32xbf16>, vector<8x32xf32> -> vector<8x32xf32>
    %c0_9 = arith.constant 0 : index
    %c0_10 = arith.constant 0 : index
    %13 = vector.load %arg6[%c0_9, %c0_10] : memref<1x32xf32, #tpu.memory_space<vmem>>, vector<1x32xf32>
    %14 = vector.broadcast %13 : vector<1x32xf32> to vector<8x32xf32>
    %15 = arith.addf %12, %14 : vector<8x32xf32>
    %cst_11 = arith.constant 0.00999999977 : f32
    %16 = vector.broadcast %cst_11 : f32 to vector<8x32xf32>
    %17 = arith.mulf %16, %15 : vector<8x32xf32>
    %18 = arith.maximumf %15, %17 : vector<8x32xf32>
    %19 = arith.truncf %18 : vector<8x32xf32> to vector<8x32xbf16>
    %c0_12 = arith.constant 0 : index
    %c0_13 = arith.constant 0 : index
    %20 = vector.load %arg7[%c0_12, %c0_13] : memref<32x256xbf16, #tpu.memory_space<vmem>>, vector<32x256xbf16>
    %cst_14 = arith.constant dense<0.000000e+00> : vector<8x256xf32>
    %21 = tpu.matmul %19, %20, %cst_14 {dimension_numbers = #tpu.dot_dimension_numbers<[1], [0], [0], [1], [0, 0, 1, 1], [], []>} : vector<8x32xbf16>, vector<32x256xbf16>, vector<8x256xf32> -> vector<8x256xf32>
    %c0_15 = arith.constant 0 : index
    %c0_16 = arith.constant 0 : index
    %22 = vector.load %arg8[%c0_15, %c0_16] : memref<1x256xf32, #tpu.memory_space<vmem>>, vector<1x256xf32>
    %23 = vector.broadcast %22 : vector<1x256xf32> to vector<8x256xf32>
    %24 = arith.addf %21, %23 : vector<8x256xf32>
    %25 = vector.extract_strided_slice %24 {offsets = [0, 0], sizes = [8, 128], strides = [1, 1]} : vector<8x256xf32> to vector<8x128xf32>
    %26 = vector.extract_strided_slice %24 {offsets = [0, 128], sizes = [8, 128], strides = [1, 1]} : vector<8x256xf32> to vector<8x128xf32>
    %27 = math.exp %26 : vector<8x128xf32>
    %c0_17 = arith.constant 0 : index
    %c0_18 = arith.constant 0 : index
    %28 = vector.load %arg2[%c0_17, %c0_18] : memref<8x128xf32, #tpu.memory_space<vmem>>, vector<8x128xf32>
    %29 = arith.mulf %27, %28 : vector<8x128xf32>
    %30 = arith.addf %25, %29 : vector<8x128xf32>
    %31 = arith.truncf %30 : vector<8x128xf32> to vector<8x128xbf16>
    %c0_19 = arith.constant 0 : index
    %c0_20 = arith.constant 0 : index
    %32 = vector.load %arg9[%c0_19, %c0_20] : memref<128x32xbf16, #tpu.memory_space<vmem>>, vector<128x32xbf16>
    %cst_21 = arith.constant dense<0.000000e+00> : vector<8x32xf32>
    %33 = tpu.matmul %31, %32, %cst_21 {dimension_numbers = #tpu.dot_dimension_numbers<[1], [0], [0], [1], [0, 0, 1, 1], [], []>} : vector<8x128xbf16>, vector<128x32xbf16>, vector<8x32xf32> -> vector<8x32xf32>
    %c0_22 = arith.constant 0 : index
    %c0_23 = arith.constant 0 : index
    %34 = vector.load %arg10[%c0_22, %c0_23] : memref<1x32xf32, #tpu.memory_space<vmem>>, vector<1x32xf32>
    %35 = vector.broadcast %34 : vector<1x32xf32> to vector<8x32xf32>
    %36 = arith.addf %33, %35 : vector<8x32xf32>
    %cst_24 = arith.constant 0.00999999977 : f32
    %37 = vector.broadcast %cst_24 : f32 to vector<8x32xf32>
    %38 = arith.mulf %37, %36 : vector<8x32xf32>
    %39 = arith.maximumf %36, %38 : vector<8x32xf32>
    %40 = arith.truncf %39 : vector<8x32xf32> to vector<8x32xbf16>
    %c0_25 = arith.constant 0 : index
    %c0_26 = arith.constant 0 : index
    %41 = vector.load %arg11[%c0_25, %c0_26] : memref<32x32xbf16, #tpu.memory_space<vmem>>, vector<32x32xbf16>
    %cst_27 = arith.constant dense<0.000000e+00> : vector<8x32xf32>
    %42 = tpu.matmul %40, %41, %cst_27 {dimension_numbers = #tpu.dot_dimension_numbers<[1], [0], [0], [1], [0, 0, 1, 1], [], []>} : vector<8x32xbf16>, vector<32x32xbf16>, vector<8x32xf32> -> vector<8x32xf32>
    %c0_28 = arith.constant 0 : index
    %c0_29 = arith.constant 0 : index
    %43 = vector.load %arg12[%c0_28, %c0_29] : memref<1x32xf32, #tpu.memory_space<vmem>>, vector<1x32xf32>
    %44 = vector.broadcast %43 : vector<1x32xf32> to vector<8x32xf32>
    %45 = arith.addf %42, %44 : vector<8x32xf32>
    %cst_30 = arith.constant 0.00999999977 : f32
    %46 = vector.broadcast %cst_30 : f32 to vector<8x32xf32>
    %47 = arith.mulf %46, %45 : vector<8x32xf32>
    %48 = arith.maximumf %45, %47 : vector<8x32xf32>
    %49 = arith.truncf %48 : vector<8x32xf32> to vector<8x32xbf16>
    %c0_31 = arith.constant 0 : index
    %c0_32 = arith.constant 0 : index
    %50 = vector.load %arg13[%c0_31, %c0_32] : memref<32x784xbf16, #tpu.memory_space<vmem>>, vector<32x784xbf16>
    %cst_33 = arith.constant dense<0.000000e+00> : vector<8x784xf32>
    %51 = tpu.matmul %49, %50, %cst_33 {dimension_numbers = #tpu.dot_dimension_numbers<[1], [0], [0], [1], [0, 0, 1, 1], [], []>} : vector<8x32xbf16>, vector<32x784xbf16>, vector<8x784xf32> -> vector<8x784xf32>
    %c0_34 = arith.constant 0 : index
    %c0_35 = arith.constant 0 : index
    %52 = vector.load %arg14[%c0_34, %c0_35] : memref<1x784xf32, #tpu.memory_space<vmem>>, vector<1x784xf32>
    %53 = vector.broadcast %52 : vector<1x784xf32> to vector<8x784xf32>
    %54 = arith.addf %51, %53 : vector<8x784xf32>
    %cst_36 = arith.constant 0.000000e+00 : f32
    %55 = vector.broadcast %cst_36 : f32 to vector<8x784xf32>
    %56 = arith.subf %55, %54 : vector<8x784xf32>
    %57 = math.exp %56 : vector<8x784xf32>
    %cst_37 = arith.constant 1.000000e+00 : f32
    %58 = vector.broadcast %cst_37 : f32 to vector<8x784xf32>
    %59 = arith.addf %58, %57 : vector<8x784xf32>
    %60 = tpu.reciprocal %59 {approx = true} : vector<8x784xf32> -> vector<8x784xf32>
    %c0_38 = arith.constant 0 : index
    %c0_39 = arith.constant 0 : index
    %61 = vector.load %arg15[%c0_38, %c0_39] : memref<8x784xf32, #tpu.memory_space<vmem>>, vector<8x784xf32>
    tpu.vector_store %arg15[%c0_38, %c0_39], %60 {strides = array<i32>} : memref<8x784xf32, #tpu.memory_space<vmem>>, vector<8x784xf32>,
    %c0_40 = arith.constant 0 : index
    %c0_41 = arith.constant 0 : index
    %62 = vector.load %arg16[%c0_40, %c0_41] : memref<8x256xf32, #tpu.memory_space<vmem>>, vector<8x256xf32>
    tpu.vector_store %arg16[%c0_40, %c0_41], %24 {strides = array<i32>} : memref<8x256xf32, #tpu.memory_space<vmem>>, vector<8x256xf32>,
    return
  }
  func.func @transform_0(%arg0: i32) -> (i32, i32) {
    %c0_i32 = arith.constant 0 : i32
    %c0_i32_0 = arith.constant 0 : i32
    return %arg0, %c0_i32 : i32, i32
  }
  func.func @transform_1(%arg0: i32) -> (i32, i32) {
    %c0_i32 = arith.constant 0 : i32
    %c0_i32_0 = arith.constant 0 : i32
    return %arg0, %c0_i32 : i32, i32
  }
  func.func @transform_2(%arg0: i32) -> (i32, i32) {
    %c0_i32 = arith.constant 0 : i32
    %c0_i32_0 = arith.constant 0 : i32
    %c0_i32_1 = arith.constant 0 : i32
    return %c0_i32, %c0_i32_0 : i32, i32
  }
  func.func @transform_3(%arg0: i32) -> (i32, i32) {
    %c0_i32 = arith.constant 0 : i32
    %c0_i32_0 = arith.constant 0 : i32
    %c0_i32_1 = arith.constant 0 : i32
    return %c0_i32, %c0_i32_0 : i32, i32
  }
  func.func @transform_4(%arg0: i32) -> (i32, i32) {
    %c0_i32 = arith.constant 0 : i32
    %c0_i32_0 = arith.constant 0 : i32
    %c0_i32_1 = arith.constant 0 : i32
    return %c0_i32, %c0_i32_0 : i32, i32
  }
  func.func @transform_5(%arg0: i32) -> (i32, i32) {
    %c0_i32 = arith.constant 0 : i32
    %c0_i32_0 = arith.constant 0 : i32
    %c0_i32_1 = arith.constant 0 : i32
    return %c0_i32, %c0_i32_0 : i32, i32
  }
  func.func @transform_6(%arg0: i32) -> (i32, i32) {
    %c0_i32 = arith.constant 0 : i32
    %c0_i32_0 = arith.constant 0 : i32
    %c0_i32_1 = arith.constant 0 : i32
    return %c0_i32, %c0_i32_0 : i32, i32
  }
  func.func @transform_7(%arg0: i32) -> (i32, i32) {
    %c0_i32 = arith.constant 0 : i32
    %c0_i32_0 = arith.constant 0 : i32
    %c0_i32_1 = arith.constant 0 : i32
    return %c0_i32, %c0_i32_0 : i32, i32
  }
  func.func @transform_8(%arg0: i32) -> (i32, i32) {
    %c0_i32 = arith.constant 0 : i32
    %c0_i32_0 = arith.constant 0 : i32
    %c0_i32_1 = arith.constant 0 : i32
    return %c0_i32, %c0_i32_0 : i32, i32
  }
  func.func @transform_9(%arg0: i32) -> (i32, i32) {
    %c0_i32 = arith.constant 0 : i32
    %c0_i32_0 = arith.constant 0 : i32
    %c0_i32_1 = arith.constant 0 : i32
    return %c0_i32, %c0_i32_0 : i32, i32
  }
  func.func @transform_10(%arg0: i32) -> (i32, i32) {
    %c0_i32 = arith.constant 0 : i32
    %c0_i32_0 = arith.constant 0 : i32
    %c0_i32_1 = arith.constant 0 : i32
    return %c0_i32, %c0_i32_0 : i32, i32
  }
  func.func @transform_11(%arg0: i32) -> (i32, i32) {
    %c0_i32 = arith.constant 0 : i32
    %c0_i32_0 = arith.constant 0 : i32
    %c0_i32_1 = arith.constant 0 : i32
    return %c0_i32, %c0_i32_0 : i32, i32
  }
  func.func @transform_12(%arg0: i32) -> (i32, i32) {
    %c0_i32 = arith.constant 0 : i32
    %c0_i32_0 = arith.constant 0 : i32
    %c0_i32_1 = arith.constant 0 : i32
    return %c0_i32, %c0_i32_0 : i32, i32
  }
  func.func @transform_13(%arg0: i32) -> (i32, i32) {
    %c0_i32 = arith.constant 0 : i32
    %c0_i32_0 = arith.constant 0 : i32
    %c0_i32_1 = arith.constant 0 : i32
    return %c0_i32, %c0_i32_0 : i32, i32
  }
  func.func @transform_14(%arg0: i32) -> (i32, i32) {
    %c0_i32 = arith.constant 0 : i32
    %c0_i32_0 = arith.constant 0 : i32
    return %arg0, %c0_i32 : i32, i32
  }
  func.func @transform_15(%arg0: i32) -> (i32, i32) {
    %c0_i32 = arith.constant 0 : i32
    %c0_i32_0 = arith.constant 0 : i32
    return %arg0, %c0_i32 : i32, i32
  }
}

</mosaic_0001>

<llo_original>
// kernel: vae_fc_forward.1
$region0: #{vae_fc_forward.1}
  #allocation0 [shape = 'u32[]', space=smem, size = 0x4, offset = 0x4, fixed_abs, tag = 'smem constant byte address 0x4 - core index']
  #allocation1 [shape = 'u32[144,128]{1,0:T(1,128)}', space=vmem, size = 0x12000, scoped, tag = 'internal scratch']
  %s0 = inlined_call_operand.vmem [shape: f32[8,784], index: 0, kind: input, shape index: {}]
  %s1 = inlined_call_operand.vmem [shape: f32[8,128], index: 1, kind: input, shape index: {}]
  %s2 = inlined_call_operand.vmem [shape: bf16[784,32], index: 2, kind: input, shape index: {}]
  %s3 = inlined_call_operand.vmem [shape: f32[1,32], index: 3, kind: input, shape index: {}]
  %s4 = inlined_call_operand.vmem [shape: bf16[32,32], index: 4, kind: input, shape index: {}]
  %s5 = inlined_call_operand.vmem [shape: f32[1,32], index: 5, kind: input, shape index: {}]
  %s6 = inlined_call_operand.vmem [shape: bf16[32,256], index: 6, kind: input, shape index: {}]
  %s7 = inlined_call_operand.vmem [shape: f32[1,256], index: 7, kind: input, shape index: {}]
  %s8 = inlined_call_operand.vmem [shape: bf16[128,32], index: 8, kind: input, shape index: {}]
  %s9 = inlined_call_operand.vmem [shape: f32[1,32], index: 9, kind: input, shape index: {}]
  %s10 = inlined_call_operand.vmem [shape: bf16[32,32], index: 10, kind: input, shape index: {}]
  %s11 = inlined_call_operand.vmem [shape: f32[1,32], index: 11, kind: input, shape index: {}]
  %s12 = inlined_call_operand.vmem [shape: bf16[32,784], index: 12, kind: input, shape index: {}]
  %s13 = inlined_call_operand.vmem [shape: f32[1,784], index: 13, kind: input, shape index: {}]
  %s14 = inlined_call_operand.vmem [shape: f32[8,784], index: 14, kind: output, shape index: {0}]
  %s15 = inlined_call_operand.vmem [shape: f32[8,256], index: 15, kind: output, shape index: {1}]
  %16 = xla_tuple %s14, %s15
  %s17 = sld [smem:[#allocation0]]
  $region74: #{vae_fc_forward.1} parent=0
    _
  %s19 = ssub.s32 1, %s17
  %s20 = scalar_select 0, %s19, %s17
  // Predicated region
  $region2: #{vae_fc_forward.1} parent=0 // pred_check
    _
  $region3: #{vae_fc_forward.1} parent=0 // pred_check_branch
    %22 = sbr.rel (0) target = $region5
  $region4: #{vae_fc_forward.1} parent=0 // pred_region
    _
  $region5: #{vae_fc_forward.1} parent=0 // pred_fallthru
    _
  // Predicated region
  $region6: #{vae_fc_forward.1} parent=0 // pred_check
    _
  $region7: #{vae_fc_forward.1} parent=0 // pred_check_branch
    %24 = sbr.rel (0) target = $region9
  $region8: #{vae_fc_forward.1} parent=0 // pred_region
    _
  $region9: #{vae_fc_forward.1} parent=0 // pred_fallthru
    _
  // Predicated region
  $region10: #{vae_fc_forward.1} parent=0 // pred_check
    _
  $region11: #{vae_fc_forward.1} parent=0 // pred_check_branch
    %26 = sbr.rel (0) target = $region13
  $region12: #{vae_fc_forward.1} parent=0 // pred_region
    _
  $region13: #{vae_fc_forward.1} parent=0 // pred_fallthru
    _
  // Predicated region
  $region14: #{vae_fc_forward.1} parent=0 // pred_check
    _
  $region15: #{vae_fc_forward.1} parent=0 // pred_check_branch
    %28 = sbr.rel (0) target = $region17
  $region16: #{vae_fc_forward.1} parent=0 // pred_region
    _
  $region17: #{vae_fc_forward.1} parent=0 // pred_fallthru
    _
  // Predicated region
  $region18: #{vae_fc_forward.1} parent=0 // pred_check
    _
  $region19: #{vae_fc_forward.1} parent=0 // pred_check_branch
    %30 = sbr.rel (0) target = $region21
  $region20: #{vae_fc_forward.1} parent=0 // pred_region
    _
  $region21: #{vae_fc_forward.1} parent=0 // pred_fallthru
    _
  // Predicated region
  $region22: #{vae_fc_forward.1} parent=0 // pred_check
    _
  $region23: #{vae_fc_forward.1} parent=0 // pred_check_branch
    %32 = sbr.rel (0) target = $region25
  $region24: #{vae_fc_forward.1} parent=0 // pred_region
    _
  $region25: #{vae_fc_forward.1} parent=0 // pred_fallthru
    _
  // Predicated region
  $region26: #{vae_fc_forward.1} parent=0 // pred_check
    _
  $region27: #{vae_fc_forward.1} parent=0 // pred_check_branch
    %34 = sbr.rel (0) target = $region29
  $region28: #{vae_fc_forward.1} parent=0 // pred_region
    _
  $region29: #{vae_fc_forward.1} parent=0 // pred_fallthru
    _
  // Predicated region
  $region30: #{vae_fc_forward.1} parent=0 // pred_check
    _
  $region31: #{vae_fc_forward.1} parent=0 // pred_check_branch
    %36 = sbr.rel (0) target = $region33
  $region32: #{vae_fc_forward.1} parent=0 // pred_region
    _
  $region33: #{vae_fc_forward.1} parent=0 // pred_fallthru
    _
  // Predicated region
  $region34: #{vae_fc_forward.1} parent=0 // pred_check
    _
  $region35: #{vae_fc_forward.1} parent=0 // pred_check_branch
    %38 = sbr.rel (0) target = $region37
  $region36: #{vae_fc_forward.1} parent=0 // pred_region
    _
  $region37: #{vae_fc_forward.1} parent=0 // pred_fallthru
    _
  // Predicated region
  $region38: #{vae_fc_forward.1} parent=0 // pred_check
    _
  $region39: #{vae_fc_forward.1} parent=0 // pred_check_branch
    %40 = sbr.rel (0) target = $region41
  $region40: #{vae_fc_forward.1} parent=0 // pred_region
    _
  $region41: #{vae_fc_forward.1} parent=0 // pred_fallthru
    _
  // Predicated region
  $region42: #{vae_fc_forward.1} parent=0 // pred_check
    _
  $region43: #{vae_fc_forward.1} parent=0 // pred_check_branch
    %42 = sbr.rel (0) target = $region45
  $region44: #{vae_fc_forward.1} parent=0 // pred_region
    _
  $region45: #{vae_fc_forward.1} parent=0 // pred_fallthru
    _
  // Predicated region
  $region46: #{vae_fc_forward.1} parent=0 // pred_check
    _
  $region47: #{vae_fc_forward.1} parent=0 // pred_check_branch
    %44 = sbr.rel (0) target = $region49
  $region48: #{vae_fc_forward.1} parent=0 // pred_region
    _
  $region49: #{vae_fc_forward.1} parent=0 // pred_fallthru
    _
  // Predicated region
  $region50: #{vae_fc_forward.1} parent=0 // pred_check
    _
  $region51: #{vae_fc_forward.1} parent=0 // pred_check_branch
    %46 = sbr.rel (0) target = $region53
  $region52: #{vae_fc_forward.1} parent=0 // pred_region
    _
  $region53: #{vae_fc_forward.1} parent=0 // pred_fallthru
    _
  // Predicated region
  $region54: #{vae_fc_forward.1} parent=0 // pred_check
    _
  $region55: #{vae_fc_forward.1} parent=0 // pred_check_branch
    %48 = sbr.rel (0) target = $region57
  $region56: #{vae_fc_forward.1} parent=0 // pred_region
    _
  $region57: #{vae_fc_forward.1} parent=0 // pred_fallthru
    _
  %v50 = vld [vmem:[%s0] sm:$0xff]
  %v51 = vld [vmem:[%s0 + $0x8] sm:$0xff]
  %v52 = vld [vmem:[%s0 + $0x10] sm:$0xff]
  %v53 = vld [vmem:[%s0 + $0x18] sm:$0xff]
  %v54 = vld [vmem:[%s0 + $0x20] sm:$0xff]
  %v55 = vld [vmem:[%s0 + $0x28] sm:$0xff]
  %v56 = vld [vmem:[%s0 + $0x30] sm:$0xff]
  %v57 = vpack.c.bf16 %v50, %v50
  %v58 = vpack.c.bf16 %v51, %v51
  %v59 = vpack.c.bf16 %v52, %v52
  %v60 = vpack.c.bf16 %v53, %v53
  %v61 = vpack.c.bf16 %v54, %v54
  %v62 = vpack.c.bf16 %v55, %v55
  %v63 = vpack.c.bf16 %v56, %v56
  %v64 = vld [vmem:[%s2] sm:$0xf]
  %v65 = vld [vmem:[%s2 + $0x4] sm:$0xf]
  %v66 = vld [vmem:[%s2 + $0x8] sm:$0xf]
  %v67 = vld [vmem:[%s2 + $0xc] sm:$0xf]
  %v68 = vld [vmem:[%s2 + $0x10] sm:$0xf]
  %v69 = vld [vmem:[%s2 + $0x14] sm:$0xf]
  %v70 = vld [vmem:[%s2 + $0x18] sm:$0xf]
  %v71 = vld [vmem:[%s2 + $0x1c] sm:$0xf]
  %v72 = vld [vmem:[%s2 + $0x20] sm:$0xf]
  %v73 = vld [vmem:[%s2 + $0x24] sm:$0xf]
  %v74 = vld [vmem:[%s2 + $0x28] sm:$0xf]
  %v75 = vld [vmem:[%s2 + $0x2c] sm:$0xf]
  %v76 = vld [vmem:[%s2 + $0x30] sm:$0xf]
  %v77 = vld [vmem:[%s2 + $0x34] sm:$0xf]
  %v78 = vld [vmem:[%s2 + $0x38] sm:$0xf]
  %v79 = vld [vmem:[%s2 + $0x3c] sm:$0xf]
  %v80 = vld [vmem:[%s2 + $0x40] sm:$0xf]
  %v81 = vld [vmem:[%s2 + $0x44] sm:$0xf]
  %v82 = vld [vmem:[%s2 + $0x48] sm:$0xf]
  %v83 = vld [vmem:[%s2 + $0x4c] sm:$0xf]
  %v84 = vld [vmem:[%s2 + $0x50] sm:$0xf]
  %v85 = vld [vmem:[%s2 + $0x54] sm:$0xf]
  %v86 = vld [vmem:[%s2 + $0x58] sm:$0xf]
  %v87 = vld [vmem:[%s2 + $0x5c] sm:$0xf]
  %v88 = vld [vmem:[%s2 + $0x60] sm:$0xf]
  %v89 = vld [vmem:[%s2 + $0x64] sm:$0xf]
  %v90 = vld [vmem:[%s2 + $0x68] sm:$0xf]
  %v91 = vld [vmem:[%s2 + $0x6c] sm:$0xf]
  %v92 = vld [vmem:[%s2 + $0x70] sm:$0xf]
  %v93 = vld [vmem:[%s2 + $0x74] sm:$0xf]
  %v94 = vld [vmem:[%s2 + $0x78] sm:$0xf]
  %v95 = vld [vmem:[%s2 + $0x7c] sm:$0xf]
  %v96 = vld [vmem:[%s2 + $0x80] sm:$0xf]
  %v97 = vld [vmem:[%s2 + $0x84] sm:$0xf]
  %v98 = vld [vmem:[%s2 + $0x88] sm:$0xf]
  %v99 = vld [vmem:[%s2 + $0x8c] sm:$0xf]
  %v100 = vld [vmem:[%s2 + $0x90] sm:$0xf]
  %v101 = vld [vmem:[%s2 + $0x94] sm:$0xf]
  %v102 = vld [vmem:[%s2 + $0x98] sm:$0xf]
  %v103 = vld [vmem:[%s2 + $0x9c] sm:$0xf]
  %v104 = vld [vmem:[%s2 + $0xa0] sm:$0xf]
  %v105 = vld [vmem:[%s2 + $0xa4] sm:$0xf]
  %v106 = vld [vmem:[%s2 + $0xa8] sm:$0xf]
  %v107 = vld [vmem:[%s2 + $0xac] sm:$0xf]
  %v108 = vld [vmem:[%s2 + $0xb0] sm:$0xf]
  %v109 = vld [vmem:[%s2 + $0xb4] sm:$0xf]
  %v110 = vld [vmem:[%s2 + $0xb8] sm:$0xf]
  %v111 = vld [vmem:[%s2 + $0xbc] sm:$0xf]
  %v112 = vld [vmem:[%s2 + $0xc0] sm:$0xf]
  %v113 = vld [vmem:[%s2 + $0xc4] sm:$0xf]
  %v114 = vld [vmem:[%s2 + $0xc8] sm:$0xf]
  %v115 = vld [vmem:[%s2 + $0xcc] sm:$0xf]
  %v116 = vld [vmem:[%s2 + $0xd0] sm:$0xf]
  %v117 = vld [vmem:[%s2 + $0xd4] sm:$0xf]
  %v118 = vld [vmem:[%s2 + $0xd8] sm:$0xf]
  %v119 = vld [vmem:[%s2 + $0xdc] sm:$0xf]
  %v120 = vld [vmem:[%s2 + $0xe0] sm:$0xf]
  %v121 = vld [vmem:[%s2 + $0xe4] sm:$0xf]
  %v122 = vld [vmem:[%s2 + $0xe8] sm:$0xf]
  %v123 = vld [vmem:[%s2 + $0xec] sm:$0xf]
  %v124 = vld [vmem:[%s2 + $0xf0] sm:$0xf]
  %v125 = vld [vmem:[%s2 + $0xf4] sm:$0xf]
  %v126 = vld [vmem:[%s2 + $0xf8] sm:$0xf]
  %v127 = vld [vmem:[%s2 + $0xfc] sm:$0xf]
  %v128 = vld [vmem:[%s2 + $0x100] sm:$0xf]
  %v129 = vld [vmem:[%s2 + $0x104] sm:$0xf]
  %v130 = vld [vmem:[%s2 + $0x108] sm:$0xf]
  %v131 = vld [vmem:[%s2 + $0x10c] sm:$0xf]
  %v132 = vld [vmem:[%s2 + $0x110] sm:$0xf]
  %v133 = vld [vmem:[%s2 + $0x114] sm:$0xf]
  %v134 = vld [vmem:[%s2 + $0x118] sm:$0xf]
  %v135 = vld [vmem:[%s2 + $0x11c] sm:$0xf]
  %v136 = vld [vmem:[%s2 + $0x120] sm:$0xf]
  %v137 = vld [vmem:[%s2 + $0x124] sm:$0xf]
  %v138 = vld [vmem:[%s2 + $0x128] sm:$0xf]
  %v139 = vld [vmem:[%s2 + $0x12c] sm:$0xf]
  %v140 = vld [vmem:[%s2 + $0x130] sm:$0xf]
  %v141 = vld [vmem:[%s2 + $0x134] sm:$0xf]
  %v142 = vld [vmem:[%s2 + $0x138] sm:$0xf]
  %v143 = vld [vmem:[%s2 + $0x13c] sm:$0xf]
  %v144 = vld [vmem:[%s2 + $0x140] sm:$0xf]
  %v145 = vld [vmem:[%s2 + $0x144] sm:$0xf]
  %v146 = vld [vmem:[%s2 + $0x148] sm:$0xf]
  %v147 = vld [vmem:[%s2 + $0x14c] sm:$0xf]
  %v148 = vld [vmem:[%s2 + $0x150] sm:$0xf]
  %v149 = vld [vmem:[%s2 + $0x154] sm:$0xf]
  %v150 = vld [vmem:[%s2 + $0x158] sm:$0xf]
  %v151 = vld [vmem:[%s2 + $0x15c] sm:$0xf]
  %v152 = vld [vmem:[%s2 + $0x160] sm:$0xf]
  %v153 = vld [vmem:[%s2 + $0x164] sm:$0xf]
  %v154 = vld [vmem:[%s2 + $0x168] sm:$0xf]
  %v155 = vld [vmem:[%s2 + $0x16c] sm:$0xf]
  %v156 = vld [vmem:[%s2 + $0x170] sm:$0xf]
  %v157 = vld [vmem:[%s2 + $0x174] sm:$0xf]
  %v158 = vld [vmem:[%s2 + $0x178] sm:$0xf]
  %v159 = vld [vmem:[%s2 + $0x17c] sm:$0xf]
  %v160 = vld [vmem:[%s2 + $0x180] sm:$0xf]
  %v161 = vld [vmem:[%s2 + $0x184] sm:$0xf]
  %v162 = vld [vmem:[%s3] sm:$0x1]
  %v164 = vlaneseq
  %v165 = vshrl.u32 %v164, 7
  %v166 = vsub.s32 0, %v165
  %v167 = vrot.slane %v162, %v166
  %v267 = vunpack.c.l.b16 %v64
  %v268 = vunpack.c.l.b16 %v65
  %v269 = vunpack.c.l.b16 %v66
  %v270 = vunpack.c.l.b16 %v67
  %v271 = vunpack.c.l.b16 %v68
  %v272 = vunpack.c.l.b16 %v69
  %v273 = vunpack.c.l.b16 %v70
  %v274 = vunpack.c.l.b16 %v71
  %v275 = vunpack.c.l.b16 %v72
  %v276 = vunpack.c.l.b16 %v73
  %v277 = vunpack.c.l.b16 %v74
  %v278 = vunpack.c.l.b16 %v75
  %v279 = vunpack.c.l.b16 %v76
  %v280 = vunpack.c.l.b16 %v77
  %v281 = vunpack.c.l.b16 %v78
  %v282 = vunpack.c.l.b16 %v79
  %v283 = vunpack.c.l.b16 %v80
  %v284 = vunpack.c.l.b16 %v81
  %v285 = vunpack.c.l.b16 %v82
  %v286 = vunpack.c.l.b16 %v83
  %v287 = vunpack.c.l.b16 %v84
  %v288 = vunpack.c.l.b16 %v85
  %v289 = vunpack.c.l.b16 %v86
  %v290 = vunpack.c.l.b16 %v87
  %v291 = vunpack.c.l.b16 %v88
  %v292 = vunpack.c.l.b16 %v89
  %v293 = vunpack.c.l.b16 %v90
  %v294 = vunpack.c.l.b16 %v91
  %v295 = vunpack.c.l.b16 %v92
  %v296 = vunpack.c.l.b16 %v93
  %v297 = vunpack.c.l.b16 %v94
  %v298 = vunpack.c.l.b16 %v95
  %v299 = vunpack.c.l.b16 %v96
  %v300 = vunpack.c.l.b16 %v97
  %v301 = vunpack.c.l.b16 %v98
  %v302 = vunpack.c.l.b16 %v99
  %v303 = vunpack.c.l.b16 %v100
  %v304 = vunpack.c.l.b16 %v101
  %v305 = vunpack.c.l.b16 %v102
  %v306 = vunpack.c.l.b16 %v103
  %v307 = vunpack.c.l.b16 %v104
  %v308 = vunpack.c.l.b16 %v105
  %v309 = vunpack.c.l.b16 %v106
  %v310 = vunpack.c.l.b16 %v107
  %v311 = vunpack.c.l.b16 %v108
  %v312 = vunpack.c.l.b16 %v109
  %v313 = vunpack.c.l.b16 %v110
  %v314 = vunpack.c.l.b16 %v111
  %v315 = vunpack.c.l.b16 %v112
  %v316 = vunpack.c.l.b16 %v113
  %v317 = vunpack.c.l.b16 %v114
  %v318 = vunpack.c.l.b16 %v115
  %v319 = vunpack.c.l.b16 %v116
  %v320 = vunpack.c.l.b16 %v117
  %v321 = vunpack.c.l.b16 %v118
  %v322 = vunpack.c.l.b16 %v119
  %v323 = vunpack.c.l.b16 %v120
  %v324 = vunpack.c.l.b16 %v121
  %v325 = vunpack.c.l.b16 %v122
  %v326 = vunpack.c.l.b16 %v123
  %v327 = vunpack.c.l.b16 %v124
  %v328 = vunpack.c.l.b16 %v125
  %v329 = vunpack.c.l.b16 %v126
  %v330 = vunpack.c.l.b16 %v127
  %v331 = vunpack.c.l.b16 %v128
  %v332 = vunpack.c.l.b16 %v129
  %v333 = vunpack.c.l.b16 %v130
  %v334 = vunpack.c.l.b16 %v131
  %v335 = vunpack.c.l.b16 %v132
  %v336 = vunpack.c.l.b16 %v133
  %v337 = vunpack.c.l.b16 %v134
  %v338 = vunpack.c.l.b16 %v135
  %v339 = vunpack.c.l.b16 %v136
  %v340 = vunpack.c.l.b16 %v137
  %v341 = vunpack.c.l.b16 %v138
  %v342 = vunpack.c.l.b16 %v139
  %v343 = vunpack.c.l.b16 %v140
  %v344 = vunpack.c.l.b16 %v141
  %v345 = vunpack.c.l.b16 %v142
  %v346 = vunpack.c.l.b16 %v143
  %v347 = vunpack.c.l.b16 %v144
  %v348 = vunpack.c.l.b16 %v145
  %v349 = vunpack.c.l.b16 %v146
  %v350 = vunpack.c.l.b16 %v147
  %v351 = vunpack.c.l.b16 %v148
  %v352 = vunpack.c.l.b16 %v149
  %v353 = vunpack.c.l.b16 %v150
  %v354 = vunpack.c.l.b16 %v151
  %v355 = vunpack.c.l.b16 %v152
  %v356 = vunpack.c.l.b16 %v153
  %v357 = vunpack.c.l.b16 %v154
  %v358 = vunpack.c.l.b16 %v155
  %v359 = vunpack.c.l.b16 %v156
  %v360 = vunpack.c.l.b16 %v157
  %v361 = vunpack.c.l.b16 %v158
  %v362 = vunpack.c.l.b16 %v159
  %v363 = vunpack.c.l.b16 %v160
  %v364 = vunpack.c.l.b16 %v161
  %v365 = vpack.c.b16 %v268, %v267
  %v366 = vpack.c.b16 %v270, %v269
  %v367 = vpack.c.b16 %v272, %v271
  %v368 = vpack.c.b16 %v274, %v273
  %v369 = vpack.c.b16 %v276, %v275
  %v370 = vpack.c.b16 %v278, %v277
  %v371 = vpack.c.b16 %v280, %v279
  %v372 = vpack.c.b16 %v282, %v281
  %v373 = vpack.c.b16 %v284, %v283
  %v374 = vpack.c.b16 %v286, %v285
  %v375 = vpack.c.b16 %v288, %v287
  %v376 = vpack.c.b16 %v290, %v289
  %v377 = vpack.c.b16 %v292, %v291
  %v378 = vpack.c.b16 %v294, %v293
  %v379 = vpack.c.b16 %v296, %v295
  %v380 = vpack.c.b16 %v298, %v297
  %v381 = vpack.c.b16 %v300, %v299
  %v382 = vpack.c.b16 %v302, %v301
  %v383 = vpack.c.b16 %v304, %v303
  %v384 = vpack.c.b16 %v306, %v305
  %v385 = vpack.c.b16 %v308, %v307
  %v386 = vpack.c.b16 %v310, %v309
  %v387 = vpack.c.b16 %v312, %v311
  %v388 = vpack.c.b16 %v314, %v313
  %v389 = vpack.c.b16 %v316, %v315
  %v390 = vpack.c.b16 %v318, %v317
  %v391 = vpack.c.b16 %v320, %v319
  %v392 = vpack.c.b16 %v322, %v321
  %v393 = vpack.c.b16 %v324, %v323
  %v394 = vpack.c.b16 %v326, %v325
  %v395 = vpack.c.b16 %v328, %v327
  %v396 = vpack.c.b16 %v330, %v329
  %v397 = vpack.c.b16 %v332, %v331
  %v398 = vpack.c.b16 %v334, %v333
  %v399 = vpack.c.b16 %v336, %v335
  %v400 = vpack.c.b16 %v338, %v337
  %v401 = vpack.c.b16 %v340, %v339
  %v402 = vpack.c.b16 %v342, %v341
  %v403 = vpack.c.b16 %v344, %v343
  %v404 = vpack.c.b16 %v346, %v345
  %v405 = vpack.c.b16 %v348, %v347
  %v406 = vpack.c.b16 %v350, %v349
  %v407 = vpack.c.b16 %v352, %v351
  %v408 = vpack.c.b16 %v354, %v353
  %v409 = vpack.c.b16 %v356, %v355
  %v410 = vpack.c.b16 %v358, %v357
  %v411 = vpack.c.b16 %v360, %v359
  %v412 = vpack.c.b16 %v362, %v361
  %v413 = vpack.c.b16 %v364, %v363
  %vm463 = vcmask 130048
  %v465 = vsel %vm463, %v63, 0
  %467 = vmatprep.subr.bf16.mxu0 0
  %468 = vmatpush1.bf16.msra.mxu0 %v372
  %469 = vmatprep.subr.bf16.mxu0 0
  %470 = vmatpush1.bf16.msra.mxu0 %v371
  %471 = vmatprep.subr.bf16.mxu0 0
  %472 = vmatpush1.bf16.msra.mxu0 %v370
  %473 = vmatprep.subr.bf16.mxu0 0
  %474 = vmatpush1.bf16.msra.mxu0 %v369
  %475 = vmatprep.subr.bf16.mxu0 0
  %476 = vmatpush1.bf16.msra.mxu0 %v368
  %477 = vmatprep.subr.bf16.mxu0 0
  %478 = vmatpush1.bf16.msra.mxu0 %v367
  %479 = vmatprep.subr.bf16.mxu0 0
  %480 = vmatpush1.bf16.msra.mxu0 %v366
  %481 = vmatprep.subr.bf16.mxu0 0
  %482 = vmatpush1.bf16.msra.mxu0 %v365
  %483 = vmatprep.subr.bf16.mxu0 0
  %484 = vmatpush2.bf16.msra.mxu0 %v380
  %485 = vmatprep.subr.bf16.mxu0 0
  %486 = vmatpush2.bf16.msra.mxu0 %v379
  %487 = vmatprep.subr.bf16.mxu0 0
  %488 = vmatpush2.bf16.msra.mxu0 %v378
  %489 = vmatprep.subr.bf16.mxu0 0
  %490 = vmatpush2.bf16.msra.mxu0 %v377
  %491 = vmatprep.subr.bf16.mxu0 0
  %492 = vmatpush2.bf16.msra.mxu0 %v376
  %493 = vmatprep.subr.bf16.mxu0 0
  %494 = vmatpush2.bf16.msra.mxu0 %v375
  %495 = vmatprep.subr.bf16.mxu0 0
  %496 = vmatpush2.bf16.msra.mxu0 %v374
  %497 = vmatprep.subr.bf16.mxu0 0
  %498 = vmatpush2.bf16.msra.mxu0 %v373
  %499 = vmatprep.mubr.bf16.mxu0 %v58
  %500 = vmatmul.mubr.bf16.gmra.mxu0 %v57
  %v501 = vpop.f32.mrf.mxu0
  %v502 = vadd.f32 %v167, %v501
  %v503 = vpop.f32.mrf.mxu0
  %v504 = vpop.f32.mrf.mxu0
  %v505 = vpop.f32.mrf.mxu0
  %506 = vdwg.mxu0
  %507 = vmatprep.subr.bf16.mxu0 0
  %508 = vmatpush1.bf16.msra.mxu0 %v388
  %509 = vmatprep.subr.bf16.mxu0 0
  %510 = vmatpush1.bf16.msra.mxu0 %v387
  %511 = vmatprep.subr.bf16.mxu0 0
  %512 = vmatpush1.bf16.msra.mxu0 %v386
  %513 = vmatprep.subr.bf16.mxu0 0
  %514 = vmatpush1.bf16.msra.mxu0 %v385
  %515 = vmatprep.subr.bf16.mxu0 0
  %516 = vmatpush1.bf16.msra.mxu0 %v384
  %517 = vmatprep.subr.bf16.mxu0 0
  %518 = vmatpush1.bf16.msra.mxu0 %v383
  %519 = vmatprep.subr.bf16.mxu0 0
  %520 = vmatpush1.bf16.msra.mxu0 %v382
  %521 = vmatprep.subr.bf16.mxu0 0
  %522 = vmatpush1.bf16.msra.mxu0 %v381
  %523 = vmatprep.subr.bf16.mxu0 0
  %524 = vmatpush2.bf16.msra.mxu0 %v396
  %525 = vmatprep.subr.bf16.mxu0 0
  %526 = vmatpush2.bf16.msra.mxu0 %v395
  %527 = vmatprep.subr.bf16.mxu0 0
  %528 = vmatpush2.bf16.msra.mxu0 %v394
  %529 = vmatprep.subr.bf16.mxu0 0
  %530 = vmatpush2.bf16.msra.mxu0 %v393
  %531 = vmatprep.subr.bf16.mxu0 0
  %532 = vmatpush2.bf16.msra.mxu0 %v392
  %533 = vmatprep.subr.bf16.mxu0 0
  %534 = vmatpush2.bf16.msra.mxu0 %v391
  %535 = vmatprep.subr.bf16.mxu0 0
  %536 = vmatpush2.bf16.msra.mxu0 %v390
  %537 = vmatprep.subr.bf16.mxu0 0
  %538 = vmatpush2.bf16.msra.mxu0 %v389
  %539 = vmatprep.mubr.bf16.mxu0 %v60
  %540 = vmatmul.mubr.bf16.gmra.mxu0 %v59
  %v541 = vpop.f32.mrf.mxu0
  %v542 = vadd.f32 %v502, %v541
  %v543 = vpop.f32.mrf.mxu0
  %v544 = vpop.f32.mrf.mxu0
  %v545 = vpop.f32.mrf.mxu0
  %546 = vdwg.mxu0
  %547 = vmatprep.subr.bf16.mxu0 0
  %548 = vmatpush1.bf16.msra.mxu0 %v404
  %549 = vmatprep.subr.bf16.mxu0 0
  %550 = vmatpush1.bf16.msra.mxu0 %v403
  %551 = vmatprep.subr.bf16.mxu0 0
  %552 = vmatpush1.bf16.msra.mxu0 %v402
  %553 = vmatprep.subr.bf16.mxu0 0
  %554 = vmatpush1.bf16.msra.mxu0 %v401
  %555 = vmatprep.subr.bf16.mxu0 0
  %556 = vmatpush1.bf16.msra.mxu0 %v400
  %557 = vmatprep.subr.bf16.mxu0 0
  %558 = vmatpush1.bf16.msra.mxu0 %v399
  %559 = vmatprep.subr.bf16.mxu0 0
  %560 = vmatpush1.bf16.msra.mxu0 %v398
  %561 = vmatprep.subr.bf16.mxu0 0
  %562 = vmatpush1.bf16.msra.mxu0 %v397
  %563 = vmatprep.subr.bf16.mxu0 0
  %564 = vmatpush2.bf16.msra.mxu0 %v412
  %565 = vmatprep.subr.bf16.mxu0 0
  %566 = vmatpush2.bf16.msra.mxu0 %v411
  %567 = vmatprep.subr.bf16.mxu0 0
  %568 = vmatpush2.bf16.msra.mxu0 %v410
  %569 = vmatprep.subr.bf16.mxu0 0
  %570 = vmatpush2.bf16.msra.mxu0 %v409
  %571 = vmatprep.subr.bf16.mxu0 0
  %572 = vmatpush2.bf16.msra.mxu0 %v408
  %573 = vmatprep.subr.bf16.mxu0 0
  %574 = vmatpush2.bf16.msra.mxu0 %v407
  %575 = vmatprep.subr.bf16.mxu0 0
  %576 = vmatpush2.bf16.msra.mxu0 %v406
  %577 = vmatprep.subr.bf16.mxu0 0
  %578 = vmatpush2.bf16.msra.mxu0 %v405
  %579 = vmatprep.mubr.bf16.mxu0 %v62
  %580 = vmatmul.mubr.bf16.gmra.mxu0 %v61
  %v581 = vpop.f32.mrf.mxu0
  %v582 = vadd.f32 %v542, %v581
  %v583 = vpop.f32.mrf.mxu0
  %v584 = vpop.f32.mrf.mxu0
  %v585 = vpop.f32.mrf.mxu0
  %586 = vdwg.mxu0
  %587 = vmatprep.subr.bf16.mxu0 0
  %588 = vmatpush1.bf16.msra.mxu0 0
  %589 = vmatprep.subr.bf16.mxu0 0
  %590 = vmatpush1.bf16.msra.mxu0 0
  %591 = vmatprep.subr.bf16.mxu0 0
  %592 = vmatpush1.bf16.msra.mxu0 0
  %593 = vmatprep.subr.bf16.mxu0 0
  %594 = vmatpush1.bf16.msra.mxu0 0
  %595 = vmatprep.subr.bf16.mxu0 0
  %596 = vmatpush1.bf16.msra.mxu0 0
  %597 = vmatprep.subr.bf16.mxu0 0
  %598 = vmatpush1.bf16.msra.mxu0 0
  %599 = vmatprep.subr.bf16.mxu0 0
  %600 = vmatpush1.bf16.msra.mxu0 0
  %601 = vmatprep.subr.bf16.mxu0 0
  %602 = vmatpush1.bf16.msra.mxu0 %v413
  %603 = vmatprep.subr.bf16.mxu0 0
  %604 = vmatpush2.bf16.msra.mxu0 0
  %605 = vmatprep.subr.bf16.mxu0 0
  %606 = vmatpush2.bf16.msra.mxu0 0
  %607 = vmatprep.subr.bf16.mxu0 0
  %608 = vmatpush2.bf16.msra.mxu0 0
  %609 = vmatprep.subr.bf16.mxu0 0
  %610 = vmatpush2.bf16.msra.mxu0 0
  %611 = vmatprep.subr.bf16.mxu0 0
  %612 = vmatpush2.bf16.msra.mxu0 0
  %613 = vmatprep.subr.bf16.mxu0 0
  %614 = vmatpush2.bf16.msra.mxu0 0
  %615 = vmatprep.subr.bf16.mxu0 0
  %616 = vmatpush2.bf16.msra.mxu0 0
  %617 = vmatprep.subr.bf16.mxu0 0
  %618 = vmatpush2.bf16.msra.mxu0 0
  %619 = vmatprep.mubr.bf16.mxu0 0
  %620 = vmatmul.mubr.bf16.gmra.mxu0 %v465
  %v621 = vpop.f32.mrf.mxu0
  %v622 = vadd.f32 %v582, %v621
  %v623 = vpop.f32.mrf.mxu0
  %v624 = vpop.f32.mrf.mxu0
  %v625 = vpop.f32.mrf.mxu0
  %626 = vdwg.mxu0
  %v627 = vmul.f32 %v622, 0.01
  %v628 = vmax.f32 %v622, %v627
  %v629 = vpack.c.bf16 %v628, %v628
  %v630 = vld [vmem:[%s4] sm:$0xf]
  %v631 = vld [vmem:[%s4 + $0x4] sm:$0xf]
  %v632 = vld [vmem:[%s4 + $0x8] sm:$0xf]
  %v633 = vld [vmem:[%s4 + $0xc] sm:$0xf]
  %v634 = vld [vmem:[%s5] sm:$0x1]
  %v636 = vlaneseq
  %v637 = vshrl.u32 %v636, 7
  %v638 = vsub.s32 0, %v637
  %v639 = vrot.slane %v634, %v638
  %v645 = vunpack.c.l.b16 %v630
  %v646 = vunpack.c.l.b16 %v631
  %v647 = vunpack.c.l.b16 %v632
  %v648 = vunpack.c.l.b16 %v633
  %v649 = vpack.c.b16 %v646, %v645
  %v650 = vpack.c.b16 %v648, %v647
  %vm653 = vcmask 261120
  %v655 = vsel %vm653, %v629, 0
  %657 = vmatprep.subr.bf16.mxu0 0
  %658 = vmatpush1.bf16.msra.mxu0 0
  %659 = vmatprep.subr.bf16.mxu0 0
  %660 = vmatpush1.bf16.msra.mxu0 0
  %661 = vmatprep.subr.bf16.mxu0 0
  %662 = vmatpush1.bf16.msra.mxu0 0
  %663 = vmatprep.subr.bf16.mxu0 0
  %664 = vmatpush1.bf16.msra.mxu0 0
  %665 = vmatprep.subr.bf16.mxu0 0
  %666 = vmatpush1.bf16.msra.mxu0 0
  %667 = vmatprep.subr.bf16.mxu0 0
  %668 = vmatpush1.bf16.msra.mxu0 0
  %669 = vmatprep.subr.bf16.mxu0 0
  %670 = vmatpush1.bf16.msra.mxu0 %v650
  %671 = vmatprep.subr.bf16.mxu0 0
  %672 = vmatpush1.bf16.msra.mxu0 %v649
  %673 = vmatprep.subr.bf16.mxu0 0
  %674 = vmatpush2.bf16.msra.mxu0 0
  %675 = vmatprep.subr.bf16.mxu0 0
  %676 = vmatpush2.bf16.msra.mxu0 0
  %677 = vmatprep.subr.bf16.mxu0 0
  %678 = vmatpush2.bf16.msra.mxu0 0
  %679 = vmatprep.subr.bf16.mxu0 0
  %680 = vmatpush2.bf16.msra.mxu0 0
  %681 = vmatprep.subr.bf16.mxu0 0
  %682 = vmatpush2.bf16.msra.mxu0 0
  %683 = vmatprep.subr.bf16.mxu0 0
  %684 = vmatpush2.bf16.msra.mxu0 0
  %685 = vmatprep.subr.bf16.mxu0 0
  %686 = vmatpush2.bf16.msra.mxu0 0
  %687 = vmatprep.subr.bf16.mxu0 0
  %688 = vmatpush2.bf16.msra.mxu0 0
  %689 = vmatprep.mubr.bf16.mxu0 0
  %690 = vmatmul.mubr.bf16.gmra.mxu0 %v655
  %v691 = vpop.f32.mrf.mxu0
  %v692 = vadd.f32 %v639, %v691
  %v693 = vpop.f32.mrf.mxu0
  %v694 = vpop.f32.mrf.mxu0
  %v695 = vpop.f32.mrf.mxu0
  %696 = vdwg.mxu0
  %v697 = vmul.f32 %v692, 0.01
  %v698 = vmax.f32 %v692, %v697
  %v699 = vpack.c.bf16 %v698, %v698
  %v700 = vld [vmem:[%s6] sm:$0xff]
  %v701 = vld [vmem:[%s6 + $0x8] sm:$0xff]
  %v702 = vld [vmem:[%s6 + $0x10] sm:$0xff]
  %v703 = vld [vmem:[%s6 + $0x18] sm:$0xff]
  %v704 = vld [vmem:[%s7] sm:$0x3]
  %v706 = vlaneseq
  %v707 = vshrl.u32 %v706, 7
  %v708 = vsub.s32 0, %v707
  %v709 = vrot.slane %v704, %v708
  %v710 = vlaneseq
  %v711 = vshrl.u32 %v710, 7
  %v712 = vsub.s32 1, %v711
  %v713 = vrot.slane %v704, %v712
  %v720 = vunpack.c.l.b16 %v700
  %v721 = vunpack.c.h.b16 %v700
  %v722 = vunpack.c.l.b16 %v701
  %v723 = vunpack.c.h.b16 %v701
  %v724 = vunpack.c.l.b16 %v702
  %v725 = vunpack.c.h.b16 %v702
  %v726 = vunpack.c.l.b16 %v703
  %v727 = vunpack.c.h.b16 %v703
  %v728 = vpack.c.b16 %v722, %v720
  %v729 = vpack.c.b16 %v723, %v721
  %v730 = vpack.c.b16 %v726, %v724
  %v731 = vpack.c.b16 %v727, %v725
  %v737 = vsel %vm653, %v699, 0
  %739 = vmatprep.subr.bf16.mxu0 0
  %740 = vmatpush1.bf16.msra.mxu0 0
  %741 = vmatprep.subr.bf16.mxu0 0
  %742 = vmatpush1.bf16.msra.mxu0 0
  %743 = vmatprep.subr.bf16.mxu0 0
  %744 = vmatpush1.bf16.msra.mxu0 0
  %745 = vmatprep.subr.bf16.mxu0 0
  %746 = vmatpush1.bf16.msra.mxu0 0
  %747 = vmatprep.subr.bf16.mxu0 0
  %748 = vmatpush1.bf16.msra.mxu0 0
  %749 = vmatprep.subr.bf16.mxu0 0
  %750 = vmatpush1.bf16.msra.mxu0 0
  %751 = vmatprep.subr.bf16.mxu0 %v731
  %752 = vmatpush1.bf16.msra.mxu0 %v730
  %753 = vmatprep.subr.bf16.mxu0 %v729
  %754 = vmatpush1.bf16.msra.mxu0 %v728
  %755 = vmatprep.subr.bf16.mxu0 0
  %756 = vmatpush2.bf16.msra.mxu0 0
  %757 = vmatprep.subr.bf16.mxu0 0
  %758 = vmatpush2.bf16.msra.mxu0 0
  %759 = vmatprep.subr.bf16.mxu0 0
  %760 = vmatpush2.bf16.msra.mxu0 0
  %761 = vmatprep.subr.bf16.mxu0 0
  %762 = vmatpush2.bf16.msra.mxu0 0
  %763 = vmatprep.subr.bf16.mxu0 0
  %764 = vmatpush2.bf16.msra.mxu0 0
  %765 = vmatprep.subr.bf16.mxu0 0
  %766 = vmatpush2.bf16.msra.mxu0 0
  %767 = vmatprep.subr.bf16.mxu0 0
  %768 = vmatpush2.bf16.msra.mxu0 0
  %769 = vmatprep.subr.bf16.mxu0 0
  %770 = vmatpush2.bf16.msra.mxu0 0
  %771 = vmatprep.mubr.bf16.mxu0 0
  %772 = vmatmul.mubr.bf16.gmra.mxu0 %v737
  %v773 = vpop.f32.mrf.mxu0
  %v774 = vadd.f32 %v709, %v773
  %v775 = vpop.f32.mrf.mxu0
  %v776 = vadd.f32 %v713, %v775
  %v777 = vpop.f32.mrf.mxu0
  %v778 = vpop.f32.mrf.mxu0
  %779 = vdwg.mxu0
  %v780 = vmul.f32 %v776, 1.442695
  %v781 = vpow.pop %v780
  %v782 = vld [vmem:[%s1] sm:$0xff]
  %v783 = vmul.f32 %v781, %v782
  %v784 = vadd.f32 %v774, %v783
  %v785 = vpack.c.bf16 %v784, %v784
  %v786 = vld [vmem:[%s8] sm:$0xf]
  %v787 = vld [vmem:[%s8 + $0x4] sm:$0xf]
  %v788 = vld [vmem:[%s8 + $0x8] sm:$0xf]
  %v789 = vld [vmem:[%s8 + $0xc] sm:$0xf]
  %v790 = vld [vmem:[%s8 + $0x10] sm:$0xf]
  %v791 = vld [vmem:[%s8 + $0x14] sm:$0xf]
  %v792 = vld [vmem:[%s8 + $0x18] sm:$0xf]
  %v793 = vld [vmem:[%s8 + $0x1c] sm:$0xf]
  %v794 = vld [vmem:[%s8 + $0x20] sm:$0xf]
  %v795 = vld [vmem:[%s8 + $0x24] sm:$0xf]
  %v796 = vld [vmem:[%s8 + $0x28] sm:$0xf]
  %v797 = vld [vmem:[%s8 + $0x2c] sm:$0xf]
  %v798 = vld [vmem:[%s8 + $0x30] sm:$0xf]
  %v799 = vld [vmem:[%s8 + $0x34] sm:$0xf]
  %v800 = vld [vmem:[%s8 + $0x38] sm:$0xf]
  %v801 = vld [vmem:[%s8 + $0x3c] sm:$0xf]
  %v802 = vld [vmem:[%s9] sm:$0x1]
  %v804 = vlaneseq
  %v805 = vshrl.u32 %v804, 7
  %v806 = vsub.s32 0, %v805
  %v807 = vrot.slane %v802, %v806
  %v825 = vunpack.c.l.b16 %v786
  %v826 = vunpack.c.l.b16 %v787
  %v827 = vunpack.c.l.b16 %v788
  %v828 = vunpack.c.l.b16 %v789
  %v829 = vunpack.c.l.b16 %v790
  %v830 = vunpack.c.l.b16 %v791
  %v831 = vunpack.c.l.b16 %v792
  %v832 = vunpack.c.l.b16 %v793
  %v833 = vunpack.c.l.b16 %v794
  %v834 = vunpack.c.l.b16 %v795
  %v835 = vunpack.c.l.b16 %v796
  %v836 = vunpack.c.l.b16 %v797
  %v837 = vunpack.c.l.b16 %v798
  %v838 = vunpack.c.l.b16 %v799
  %v839 = vunpack.c.l.b16 %v800
  %v840 = vunpack.c.l.b16 %v801
  %v841 = vpack.c.b16 %v826, %v825
  %v842 = vpack.c.b16 %v828, %v827
  %v843 = vpack.c.b16 %v830, %v829
  %v844 = vpack.c.b16 %v832, %v831
  %v845 = vpack.c.b16 %v834, %v833
  %v846 = vpack.c.b16 %v836, %v835
  %v847 = vpack.c.b16 %v838, %v837
  %v848 = vpack.c.b16 %v840, %v839
  %857 = vmatprep.subr.bf16.mxu0 0
  %858 = vmatpush1.bf16.msra.mxu0 %v848
  %859 = vmatprep.subr.bf16.mxu0 0
  %860 = vmatpush1.bf16.msra.mxu0 %v847
  %861 = vmatprep.subr.bf16.mxu0 0
  %862 = vmatpush1.bf16.msra.mxu0 %v846
  %863 = vmatprep.subr.bf16.mxu0 0
  %864 = vmatpush1.bf16.msra.mxu0 %v845
  %865 = vmatprep.subr.bf16.mxu0 0
  %866 = vmatpush1.bf16.msra.mxu0 %v844
  %867 = vmatprep.subr.bf16.mxu0 0
  %868 = vmatpush1.bf16.msra.mxu0 %v843
  %869 = vmatprep.subr.bf16.mxu0 0
  %870 = vmatpush1.bf16.msra.mxu0 %v842
  %871 = vmatprep.subr.bf16.mxu0 0
  %872 = vmatpush1.bf16.msra.mxu0 %v841
  %873 = vmatprep.subr.bf16.mxu0 0
  %874 = vmatpush2.bf16.msra.mxu0 0
  %875 = vmatprep.subr.bf16.mxu0 0
  %876 = vmatpush2.bf16.msra.mxu0 0
  %877 = vmatprep.subr.bf16.mxu0 0
  %878 = vmatpush2.bf16.msra.mxu0 0
  %879 = vmatprep.subr.bf16.mxu0 0
  %880 = vmatpush2.bf16.msra.mxu0 0
  %881 = vmatprep.subr.bf16.mxu0 0
  %882 = vmatpush2.bf16.msra.mxu0 0
  %883 = vmatprep.subr.bf16.mxu0 0
  %884 = vmatpush2.bf16.msra.mxu0 0
  %885 = vmatprep.subr.bf16.mxu0 0
  %886 = vmatpush2.bf16.msra.mxu0 0
  %887 = vmatprep.subr.bf16.mxu0 0
  %888 = vmatpush2.bf16.msra.mxu0 0
  %889 = vmatprep.mubr.bf16.mxu0 0
  %890 = vmatmul.mubr.bf16.gmra.mxu0 %v785
  %v891 = vpop.f32.mrf.mxu0
  %v892 = vadd.f32 %v807, %v891
  %v893 = vpop.f32.mrf.mxu0
  %v894 = vpop.f32.mrf.mxu0
  %v895 = vpop.f32.mrf.mxu0
  %896 = vdwg.mxu0
  %v897 = vmul.f32 %v892, 0.01
  %v898 = vmax.f32 %v892, %v897
  %v899 = vpack.c.bf16 %v898, %v898
  %v900 = vld [vmem:[%s10] sm:$0xf]
  %v901 = vld [vmem:[%s10 + $0x4] sm:$0xf]
  %v902 = vld [vmem:[%s10 + $0x8] sm:$0xf]
  %v903 = vld [vmem:[%s10 + $0xc] sm:$0xf]
  %v904 = vld [vmem:[%s11] sm:$0x1]
  %v906 = vlaneseq
  %v907 = vshrl.u32 %v906, 7
  %v908 = vsub.s32 0, %v907
  %v909 = vrot.slane %v904, %v908
  %v915 = vunpack.c.l.b16 %v900
  %v916 = vunpack.c.l.b16 %v901
  %v917 = vunpack.c.l.b16 %v902
  %v918 = vunpack.c.l.b16 %v903
  %v919 = vpack.c.b16 %v916, %v915
  %v920 = vpack.c.b16 %v918, %v917
  %v924 = vsel %vm653, %v899, 0
  %926 = vmatprep.subr.bf16.mxu0 0
  %927 = vmatpush1.bf16.msra.mxu0 0
  %928 = vmatprep.subr.bf16.mxu0 0
  %929 = vmatpush1.bf16.msra.mxu0 0
  %930 = vmatprep.subr.bf16.mxu0 0
  %931 = vmatpush1.bf16.msra.mxu0 0
  %932 = vmatprep.subr.bf16.mxu0 0
  %933 = vmatpush1.bf16.msra.mxu0 0
  %934 = vmatprep.subr.bf16.mxu0 0
  %935 = vmatpush1.bf16.msra.mxu0 0
  %936 = vmatprep.subr.bf16.mxu0 0
  %937 = vmatpush1.bf16.msra.mxu0 0
  %938 = vmatprep.subr.bf16.mxu0 0
  %939 = vmatpush1.bf16.msra.mxu0 %v920
  %940 = vmatprep.subr.bf16.mxu0 0
  %941 = vmatpush1.bf16.msra.mxu0 %v919
  %942 = vmatprep.subr.bf16.mxu0 0
  %943 = vmatpush2.bf16.msra.mxu0 0
  %944 = vmatprep.subr.bf16.mxu0 0
  %945 = vmatpush2.bf16.msra.mxu0 0
  %946 = vmatprep.subr.bf16.mxu0 0
  %947 = vmatpush2.bf16.msra.mxu0 0
  %948 = vmatprep.subr.bf16.mxu0 0
  %949 = vmatpush2.bf16.msra.mxu0 0
  %950 = vmatprep.subr.bf16.mxu0 0
  %951 = vmatpush2.bf16.msra.mxu0 0
  %952 = vmatprep.subr.bf16.mxu0 0
  %953 = vmatpush2.bf16.msra.mxu0 0
  %954 = vmatprep.subr.bf16.mxu0 0
  %955 = vmatpush2.bf16.msra.mxu0 0
  %956 = vmatprep.subr.bf16.mxu0 0
  %957 = vmatpush2.bf16.msra.mxu0 0
  %958 = vmatprep.mubr.bf16.mxu0 0
  %959 = vmatmul.mubr.bf16.gmra.mxu0 %v924
  %v960 = vpop.f32.mrf.mxu0
  %v961 = vadd.f32 %v909, %v960
  %v962 = vpop.f32.mrf.mxu0
  %v963 = vpop.f32.mrf.mxu0
  %v964 = vpop.f32.mrf.mxu0
  %965 = vdwg.mxu0
  %v966 = vmul.f32 %v961, 0.01
  %v967 = vmax.f32 %v961, %v966
  %v968 = vpack.c.bf16 %v967, %v967
  %v969 = vld [vmem:[%s12] sm:$0xff]
  %v970 = vld [vmem:[%s12 + $0x8] sm:$0xff]
  %v971 = vld [vmem:[%s12 + $0x10] sm:$0xff]
  %v972 = vld [vmem:[%s12 + $0x18] sm:$0xf]
  %v973 = vld [vmem:[%s12 + $0x1c] sm:$0xff]
  %v974 = vld [vmem:[%s12 + $0x24] sm:$0xff]
  %v975 = vld [vmem:[%s12 + $0x2c] sm:$0xff]
  %v976 = vld [vmem:[%s12 + $0x34] sm:$0xf]
  %v977 = vld [vmem:[%s12 + $0x38] sm:$0xff]
  %v978 = vld [vmem:[%s12 + $0x40] sm:$0xff]
  %v979 = vld [vmem:[%s12 + $0x48] sm:$0xff]
  %v980 = vld [vmem:[%s12 + $0x50] sm:$0xf]
  %v981 = vld [vmem:[%s12 + $0x54] sm:$0xff]
  %v982 = vld [vmem:[%s12 + $0x5c] sm:$0xff]
  %v983 = vld [vmem:[%s12 + $0x64] sm:$0xff]
  %v984 = vld [vmem:[%s12 + $0x6c] sm:$0xf]
  %v985 = vld [vmem:[%s13] sm:$0x7f]
  %v987 = vlaneseq
  %v988 = vshrl.u32 %v987, 7
  %v989 = vsub.s32 0, %v988
  %v990 = vrot.slane %v985, %v989
  %v991 = vlaneseq
  %v992 = vshrl.u32 %v991, 7
  %v993 = vsub.s32 1, %v992
  %v994 = vrot.slane %v985, %v993
  %v995 = vlaneseq
  %v996 = vshrl.u32 %v995, 7
  %v997 = vsub.s32 2, %v996
  %v998 = vrot.slane %v985, %v997
  %v999 = vlaneseq
  %v1000 = vshrl.u32 %v999, 7
  %v1001 = vsub.s32 3, %v1000
  %v1002 = vrot.slane %v985, %v1001
  %v1003 = vlaneseq
  %v1004 = vshrl.u32 %v1003, 7
  %v1005 = vsub.s32 4, %v1004
  %v1006 = vrot.slane %v985, %v1005
  %v1007 = vlaneseq
  %v1008 = vshrl.u32 %v1007, 7
  %v1009 = vsub.s32 5, %v1008
  %v1010 = vrot.slane %v985, %v1009
  %v1011 = vlaneseq
  %v1012 = vshrl.u32 %v1011, 7
  %v1013 = vsub.s32 6, %v1012
  %v1014 = vrot.slane %v985, %v1013
  %v1038 = vunpack.c.l.b16 %v969
  %v1039 = vunpack.c.h.b16 %v969
  %v1040 = vunpack.c.l.b16 %v970
  %v1041 = vunpack.c.h.b16 %v970
  %v1042 = vunpack.c.l.b16 %v971
  %v1043 = vunpack.c.h.b16 %v971
  %v1044 = vunpack.c.l.b16 %v972
  %v1045 = vunpack.c.l.b16 %v973
  %v1046 = vunpack.c.h.b16 %v973
  %v1047 = vunpack.c.l.b16 %v974
  %v1048 = vunpack.c.h.b16 %v974
  %v1049 = vunpack.c.l.b16 %v975
  %v1050 = vunpack.c.h.b16 %v975
  %v1051 = vunpack.c.l.b16 %v976
  %v1052 = vunpack.c.l.b16 %v977
  %v1053 = vunpack.c.h.b16 %v977
  %v1054 = vunpack.c.l.b16 %v978
  %v1055 = vunpack.c.h.b16 %v978
  %v1056 = vunpack.c.l.b16 %v979
  %v1057 = vunpack.c.h.b16 %v979
  %v1058 = vunpack.c.l.b16 %v980
  %v1059 = vunpack.c.l.b16 %v981
  %v1060 = vunpack.c.h.b16 %v981
  %v1061 = vunpack.c.l.b16 %v982
  %v1062 = vunpack.c.h.b16 %v982
  %v1063 = vunpack.c.l.b16 %v983
  %v1064 = vunpack.c.h.b16 %v983
  %v1065 = vunpack.c.l.b16 %v984
  %v1066 = vpack.c.b16 %v1045, %v1038
  %v1067 = vpack.c.b16 %v1046, %v1039
  %v1068 = vpack.c.b16 %v1047, %v1040
  %v1069 = vpack.c.b16 %v1048, %v1041
  %v1070 = vpack.c.b16 %v1049, %v1042
  %v1071 = vpack.c.b16 %v1050, %v1043
  %v1072 = vpack.c.b16 %v1051, %v1044
  %v1073 = vpack.c.b16 %v1059, %v1052
  %v1074 = vpack.c.b16 %v1060, %v1053
  %v1075 = vpack.c.b16 %v1061, %v1054
  %v1076 = vpack.c.b16 %v1062, %v1055
  %v1077 = vpack.c.b16 %v1063, %v1056
  %v1078 = vpack.c.b16 %v1064, %v1057
  %v1079 = vpack.c.b16 %v1065, %v1058
  %v1095 = vsel %vm653, %v968, 0
  %1097 = vmatprep.subr.bf16.mxu0 0
  %1098 = vmatpush1.bf16.msra.mxu0 0
  %1099 = vmatprep.subr.bf16.mxu0 0
  %1100 = vmatpush1.bf16.msra.mxu0 0
  %1101 = vmatprep.subr.bf16.mxu0 0
  %1102 = vmatpush1.bf16.msra.mxu0 0
  %1103 = vmatprep.subr.bf16.mxu0 0
  %1104 = vmatpush1.bf16.msra.mxu0 0
  %1105 = vmatprep.subr.bf16.mxu0 0
  %1106 = vmatpush1.bf16.msra.mxu0 0
  %1107 = vmatprep.subr.bf16.mxu0 0
  %1108 = vmatpush1.bf16.msra.mxu0 0
  %1109 = vmatprep.subr.bf16.mxu0 %v1074
  %1110 = vmatpush1.bf16.msra.mxu0 %v1073
  %1111 = vmatprep.subr.bf16.mxu0 %v1067
  %1112 = vmatpush1.bf16.msra.mxu0 %v1066
  %1113 = vmatprep.subr.bf16.mxu0 0
  %1114 = vmatpush2.bf16.msra.mxu0 0
  %1115 = vmatprep.subr.bf16.mxu0 0
  %1116 = vmatpush2.bf16.msra.mxu0 0
  %1117 = vmatprep.subr.bf16.mxu0 0
  %1118 = vmatpush2.bf16.msra.mxu0 0
  %1119 = vmatprep.subr.bf16.mxu0 0
  %1120 = vmatpush2.bf16.msra.mxu0 0
  %1121 = vmatprep.subr.bf16.mxu0 0
  %1122 = vmatpush2.bf16.msra.mxu0 0
  %1123 = vmatprep.subr.bf16.mxu0 0
  %1124 = vmatpush2.bf16.msra.mxu0 0
  %1125 = vmatprep.subr.bf16.mxu0 0
  %1126 = vmatpush2.bf16.msra.mxu0 0
  %1127 = vmatprep.subr.bf16.mxu0 0
  %1128 = vmatpush2.bf16.msra.mxu0 0
  %1129 = vmatprep.mubr.bf16.mxu0 0
  %1130 = vmatmul.mubr.bf16.gmra.mxu0 %v1095
  %v1131 = vpop.f32.mrf.mxu0
  %v1132 = vadd.f32 %v990, %v1131
  %v1133 = vpop.f32.mrf.mxu0
  %v1134 = vadd.f32 %v994, %v1133
  %v1135 = vpop.f32.mrf.mxu0
  %v1136 = vpop.f32.mrf.mxu0
  %1137 = vdwg.mxu0
  %1138 = vmatprep.subr.bf16.mxu0 0
  %1139 = vmatpush1.bf16.msra.mxu0 0
  %1140 = vmatprep.subr.bf16.mxu0 0
  %1141 = vmatpush1.bf16.msra.mxu0 0
  %1142 = vmatprep.subr.bf16.mxu0 0
  %1143 = vmatpush1.bf16.msra.mxu0 0
  %1144 = vmatprep.subr.bf16.mxu0 0
  %1145 = vmatpush1.bf16.msra.mxu0 0
  %1146 = vmatprep.subr.bf16.mxu0 0
  %1147 = vmatpush1.bf16.msra.mxu0 0
  %1148 = vmatprep.subr.bf16.mxu0 0
  %1149 = vmatpush1.bf16.msra.mxu0 0
  %1150 = vmatprep.subr.bf16.mxu0 %v1076
  %1151 = vmatpush1.bf16.msra.mxu0 %v1075
  %1152 = vmatprep.subr.bf16.mxu0 %v1069
  %1153 = vmatpush1.bf16.msra.mxu0 %v1068
  %1154 = vmatprep.subr.bf16.mxu0 0
  %1155 = vmatpush2.bf16.msra.mxu0 0
  %1156 = vmatprep.subr.bf16.mxu0 0
  %1157 = vmatpush2.bf16.msra.mxu0 0
  %1158 = vmatprep.subr.bf16.mxu0 0
  %1159 = vmatpush2.bf16.msra.mxu0 0
  %1160 = vmatprep.subr.bf16.mxu0 0
  %1161 = vmatpush2.bf16.msra.mxu0 0
  %1162 = vmatprep.subr.bf16.mxu0 0
  %1163 = vmatpush2.bf16.msra.mxu0 0
  %1164 = vmatprep.subr.bf16.mxu0 0
  %1165 = vmatpush2.bf16.msra.mxu0 0
  %1166 = vmatprep.subr.bf16.mxu0 0
  %1167 = vmatpush2.bf16.msra.mxu0 0
  %1168 = vmatprep.subr.bf16.mxu0 0
  %1169 = vmatpush2.bf16.msra.mxu0 0
  %1170 = vmatprep.mubr.bf16.mxu0 0
  %1171 = vmatmul.mubr.bf16.gmra.mxu0 %v1095
  %v1172 = vpop.f32.mrf.mxu0
  %v1173 = vadd.f32 %v998, %v1172
  %v1174 = vpop.f32.mrf.mxu0
  %v1175 = vadd.f32 %v1002, %v1174
  %v1176 = vpop.f32.mrf.mxu0
  %v1177 = vpop.f32.mrf.mxu0
  %1178 = vdwg.mxu0
  %1179 = vmatprep.subr.bf16.mxu0 0
  %1180 = vmatpush1.bf16.msra.mxu0 0
  %1181 = vmatprep.subr.bf16.mxu0 0
  %1182 = vmatpush1.bf16.msra.mxu0 0
  %1183 = vmatprep.subr.bf16.mxu0 0
  %1184 = vmatpush1.bf16.msra.mxu0 0
  %1185 = vmatprep.subr.bf16.mxu0 0
  %1186 = vmatpush1.bf16.msra.mxu0 0
  %1187 = vmatprep.subr.bf16.mxu0 0
  %1188 = vmatpush1.bf16.msra.mxu0 0
  %1189 = vmatprep.subr.bf16.mxu0 0
  %1190 = vmatpush1.bf16.msra.mxu0 0
  %1191 = vmatprep.subr.bf16.mxu0 %v1078
  %1192 = vmatpush1.bf16.msra.mxu0 %v1077
  %1193 = vmatprep.subr.bf16.mxu0 %v1071
  %1194 = vmatpush1.bf16.msra.mxu0 %v1070
  %1195 = vmatprep.subr.bf16.mxu0 0
  %1196 = vmatpush2.bf16.msra.mxu0 0
  %1197 = vmatprep.subr.bf16.mxu0 0
  %1198 = vmatpush2.bf16.msra.mxu0 0
  %1199 = vmatprep.subr.bf16.mxu0 0
  %1200 = vmatpush2.bf16.msra.mxu0 0
  %1201 = vmatprep.subr.bf16.mxu0 0
  %1202 = vmatpush2.bf16.msra.mxu0 0
  %1203 = vmatprep.subr.bf16.mxu0 0
  %1204 = vmatpush2.bf16.msra.mxu0 0
  %1205 = vmatprep.subr.bf16.mxu0 0
  %1206 = vmatpush2.bf16.msra.mxu0 0
  %1207 = vmatprep.subr.bf16.mxu0 0
  %1208 = vmatpush2.bf16.msra.mxu0 0
  %1209 = vmatprep.subr.bf16.mxu0 0
  %1210 = vmatpush2.bf16.msra.mxu0 0
  %1211 = vmatprep.mubr.bf16.mxu0 0
  %1212 = vmatmul.mubr.bf16.gmra.mxu0 %v1095
  %v1213 = vpop.f32.mrf.mxu0
  %v1214 = vadd.f32 %v1006, %v1213
  %v1215 = vpop.f32.mrf.mxu0
  %v1216 = vadd.f32 %v1010, %v1215
  %v1217 = vpop.f32.mrf.mxu0
  %v1218 = vpop.f32.mrf.mxu0
  %1219 = vdwg.mxu0
  %1220 = vmatprep.subr.bf16.mxu0 0
  %1221 = vmatpush1.bf16.msra.mxu0 0
  %1222 = vmatprep.subr.bf16.mxu0 0
  %1223 = vmatpush1.bf16.msra.mxu0 0
  %1224 = vmatprep.subr.bf16.mxu0 0
  %1225 = vmatpush1.bf16.msra.mxu0 0
  %1226 = vmatprep.subr.bf16.mxu0 0
  %1227 = vmatpush1.bf16.msra.mxu0 0
  %1228 = vmatprep.subr.bf16.mxu0 0
  %1229 = vmatpush1.bf16.msra.mxu0 0
  %1230 = vmatprep.subr.bf16.mxu0 0
  %1231 = vmatpush1.bf16.msra.mxu0 0
  %1232 = vmatprep.subr.bf16.mxu0 0
  %1233 = vmatpush1.bf16.msra.mxu0 %v1079
  %1234 = vmatprep.subr.bf16.mxu0 0
  %1235 = vmatpush1.bf16.msra.mxu0 %v1072
  %1236 = vmatprep.subr.bf16.mxu0 0
  %1237 = vmatpush2.bf16.msra.mxu0 0
  %1238 = vmatprep.subr.bf16.mxu0 0
  %1239 = vmatpush2.bf16.msra.mxu0 0
  %1240 = vmatprep.subr.bf16.mxu0 0
  %1241 = vmatpush2.bf16.msra.mxu0 0
  %1242 = vmatprep.subr.bf16.mxu0 0
  %1243 = vmatpush2.bf16.msra.mxu0 0
  %1244 = vmatprep.subr.bf16.mxu0 0
  %1245 = vmatpush2.bf16.msra.mxu0 0
  %1246 = vmatprep.subr.bf16.mxu0 0
  %1247 = vmatpush2.bf16.msra.mxu0 0
  %1248 = vmatprep.subr.bf16.mxu0 0
  %1249 = vmatpush2.bf16.msra.mxu0 0
  %1250 = vmatprep.subr.bf16.mxu0 0
  %1251 = vmatpush2.bf16.msra.mxu0 0
  %1252 = vmatprep.mubr.bf16.mxu0 0
  %1253 = vmatmul.mubr.bf16.gmra.mxu0 %v1095
  %v1254 = vpop.f32.mrf.mxu0
  %v1255 = vadd.f32 %v1014, %v1254
  %v1256 = vpop.f32.mrf.mxu0
  %v1257 = vpop.f32.mrf.mxu0
  %v1258 = vpop.f32.mrf.mxu0
  %1259 = vdwg.mxu0
  %v1260 = vsub.f32 0.0, %v1132
  %v1261 = vsub.f32 0.0, %v1134
  %v1262 = vsub.f32 0.0, %v1173
  %v1263 = vsub.f32 0.0, %v1175
  %v1264 = vsub.f32 0.0, %v1214
  %v1265 = vsub.f32 0.0, %v1216
  %v1266 = vsub.f32 0.0, %v1255
  %v1267 = vmul.f32 %v1260, 1.442695
  %v1268 = vpow.pop %v1267
  %v1269 = vmul.f32 %v1261, 1.442695
  %v1270 = vpow.pop %v1269
  %v1271 = vmul.f32 %v1262, 1.442695
  %v1272 = vpow.pop %v1271
  %v1273 = vmul.f32 %v1263, 1.442695
  %v1274 = vpow.pop %v1273
  %v1275 = vmul.f32 %v1264, 1.442695
  %v1276 = vpow.pop %v1275
  %v1277 = vmul.f32 %v1265, 1.442695
  %v1278 = vpow.pop %v1277
  %v1279 = vmul.f32 %v1266, 1.442695
  %v1280 = vpow.pop %v1279
  %v1281 = vadd.f32 %v1268, 1.0
  %v1282 = vadd.f32 %v1270, 1.0
  %v1283 = vadd.f32 %v1272, 1.0
  %v1284 = vadd.f32 %v1274, 1.0
  %v1285 = vadd.f32 %v1276, 1.0
  %v1286 = vadd.f32 %v1278, 1.0
  %v1287 = vadd.f32 %v1280, 1.0
  %v1288 = vrcp.pop %v1281
  %v1289 = vrcp.pop %v1282
  %v1290 = vrcp.pop %v1283
  %v1291 = vrcp.pop %v1284
  %v1292 = vrcp.pop %v1285
  %v1293 = vrcp.pop %v1286
  %v1294 = vrcp.pop %v1287
  %1295 = vst [vmem:[%s14] sm:$0xff] %v1288
  %1296 = vst [vmem:[%s14 + $0x8] sm:$0xff] %v1289
  %1297 = vst [vmem:[%s14 + $0x10] sm:$0xff] %v1290
  %1298 = vst [vmem:[%s14 + $0x18] sm:$0xff] %v1291
  %1299 = vst [vmem:[%s14 + $0x20] sm:$0xff] %v1292
  %1300 = vst [vmem:[%s14 + $0x28] sm:$0xff] %v1293
  %1301 = vst.msk [vmem:[%s14 + $0x30] sm:$0xff] %vm463, %v1294
  %1302 = vst [vmem:[%s15] sm:$0xff] %v774
  %1303 = vst [vmem:[%s15 + $0x8] sm:$0xff] %v776
  // Predicated region
  $region58: #{vae_fc_forward.1} parent=0 // pred_check
    _
  $region59: #{vae_fc_forward.1} parent=0 // pred_check_branch
    %1305 = sbr.rel (0) target = $region61
  $region60: #{vae_fc_forward.1} parent=0 // pred_region
    _
  $region61: #{vae_fc_forward.1} parent=0 // pred_fallthru
    _
  // Predicated region
  $region62: #{vae_fc_forward.1} parent=0 // pred_check
    _
  $region63: #{vae_fc_forward.1} parent=0 // pred_check_branch
    %1307 = sbr.rel (0) target = $region65
  $region64: #{vae_fc_forward.1} parent=0 // pred_region
    _
  $region65: #{vae_fc_forward.1} parent=0 // pred_fallthru
    _
  // Predicated region
  $region66: #{vae_fc_forward.1} parent=0 // pred_check
    _
  $region67: #{vae_fc_forward.1} parent=0 // pred_check_branch
    %1309 = sbr.rel (0) target = $region69
  $region68: #{vae_fc_forward.1} parent=0 // pred_region
    _
  $region69: #{vae_fc_forward.1} parent=0 // pred_fallthru
    _
  // Predicated region
  $region70: #{vae_fc_forward.1} parent=0 // pred_check
    _
  $region71: #{vae_fc_forward.1} parent=0 // pred_check_branch
    %1311 = sbr.rel (0) target = $region73
  $region72: #{vae_fc_forward.1} parent=0 // pred_region
    _
  $region73: #{vae_fc_forward.1} parent=0 // pred_fallthru
    _

</llo_original>
